<compile_context>
chip_gen: v6e
topology: v6e:2x2x1
jax: 0.10.0
libtpu: 0.0.40
codegen_flags: <defaults>
</compile_context>

<pallas_src>
import functools

import jax
import jax.numpy as jnp
import numpy as np
from jax import lax
from jax.experimental import pallas as pl
from jax.experimental.pallas import tpu as pltpu


def _leaky_relu(x, slope=0.1):
    return jnp.where(x >= 0, x, slope * x)


def _pointwise(w, x, use_mxu):
    """out[r, p] = sum_j w[r, j] * x[j, p]; w: (R, R), x: (R, HW); f32 accumulation."""
    if use_mxu:
        # bf16 weights -> bf16 MXU matmul with f32 accumulation; f32 -> f32 matmul.
        return jnp.dot(w, x.astype(w.dtype), preferred_element_type=jnp.float32)
    R = x.shape[0]
    wf = w.astype(jnp.float32)
    xf = x.astype(jnp.float32)
    # Two independent accumulator chains break the serial FMA dependence.
    acc0 = wf[:, 0:1] * xf[0:1, :]
    acc1 = wf[:, 1:2] * xf[1:2, :] if R > 1 else None
    for j in range(2, R):
        t = wf[:, j:j + 1] * xf[j:j + 1, :]
        if j % 2 == 0:
            acc0 = acc0 + t
        else:
            acc1 = acc1 + t
    return acc0 if acc1 is None else acc0 + acc1


def _ffn_kernel(x_ref, w1_ref, dw_ref, w2_ref, mask_ref, o_ref, *, W_img, use_mxu):
    # x_ref : (NBG, R, HW) packed batch groups, flattened spatial on lanes
    # w1_ref: (R, R) block-diag 1x1 weight   dw_ref: (R, 9) depthwise taps
    # w2_ref: (R, R) block-diag 1x1 weight   mask_ref: (4, HW) f32 boundary masks
    nbg, R, HW = x_ref.shape

    w1 = w1_ref[...]
    w2 = w2_ref[...]
    dw = dw_ref[...].astype(jnp.float32)
    m = mask_ref[...]
    m_cl = m[0:1, :]   # col >= 1     (left  neighbour exists)
    m_cr = m[1:2, :]   # col <= W-2   (right neighbour exists)
    m_ru = m[2:3, :]   # row >= 1     (upper neighbour exists)
    m_rd = m[3:4, :]   # row <= H-2   (lower neighbour exists)

    sh_up = W_img % HW
    sh_dn = (HW - W_img) % HW

    @pl.loop(0, nbg)
    def _(g):
        x2 = x_ref[g]                                          # (R, HW)
        # ---- 1x1 conv + LeakyReLU -------------------------------------
        y1 = _leaky_relu(_pointwise(w1, x2, use_mxu))          # (R, HW) f32
        # ---- separable depthwise 3x3 (padding=1): 4 rolls + 4 mask muls ----
        left = pltpu.roll(y1, 1, 1) * m_cl                     # y1[p-1]
        right = pltpu.roll(y1, HW - 1, 1) * m_cr               # y1[p+1]
        h_m1 = dw[:, 0:1] * left + dw[:, 1:2] * y1 + dw[:, 2:3] * right
        h_0 = dw[:, 3:4] * left + dw[:, 4:5] * y1 + dw[:, 5:6] * right
        h_p1 = dw[:, 6:7] * left + dw[:, 7:8] * y1 + dw[:, 8:9] * right
        up = pltpu.roll(h_m1, sh_up, 1) * m_ru                 # h_m1[p - W]
        down = pltpu.roll(h_p1, sh_dn, 1) * m_rd               # h_p1[p + W]
        y2 = _leaky_relu(h_0 + up + down)
        # ---- 1x1 conv ---------------------------------------------------
        out = _pointwise(w2, y2, use_mxu)
        o_ref[g] = out.astype(o_ref.dtype)


def _boundary_masks(H, W):
    """(4, H*W) f32 {0,1} masks: [left ok, right ok, up ok, down ok] per lane."""
    p = np.arange(H * W, dtype=np.int32)
    col = p % W
    row = p // W
    m = np.stack([col >= 1, col <= W - 2, row >= 1, row <= H - 2])
    return jnp.asarray(m.astype(np.float32))


def _mxu_config(C):
    """Generation-aware crossover for routing the 1x1 convs to the MXU (K=C)."""
    mxu = 256                          # v6e / v7x
    try:
        info = pltpu.get_tpu_info()
        for name in ("mxu_contracting_size", "mxu_size", "mxu_dim"):
            v = getattr(info, name, None)
            if v:
                mxu = int(v)
                break
    except Exception:
        pass
    crossover = 32 if mxu <= 128 else 64   # v5e's 128-wide MXU breaks even earlier
    return C >= crossover, mxu


def _vmem_limit(block_io_bytes, group_f32_bytes, resident_bytes):
    """vmem_limit_bytes from actual block sizes, clipped to ~75% of capacity."""
    cap = 64 * 1024 * 1024             # conservative default (v7x per-TC VMEM)
    try:
        cap = int(pltpu.get_tpu_info().vmem_capacity_bytes)
    except Exception:
        pass
    need = (4 * block_io_bytes         # in + out blocks, double buffered
            + resident_bytes           # weights / taps / masks (resident)
            + 12 * group_f32_bytes     # live f32 temporaries per group
            + (2 << 20))               # compiler scratch headroom
    return int(min(cap * 3 // 4, max(need, 32 * 1024 * 1024)))


def _choose_layout(N, C, HW, itemsize, target_block_bytes=2 * 1024 * 1024):
    """Pick (sublane packing nbp, groups-per-block nbg, group count G).

    nbp : batch elements packed onto sublanes (C < 8 under-fills the 8 f32
          sublanes of a vreg; packing recovers VPU throughput).
    nbg : packed groups per grid block, sized toward ~target_block_bytes so
          per-step overhead / tiny DMAs do not dominate, while keeping >= 2
          grid steps when N >= 2 so both v7x TensorCores get work.
    """
    min_grid = 2 if N >= 2 else 1
    nbp = 1
    if C < 8:
        for cand in range(min(8 // C, N), 0, -1):
            if N % cand == 0 and (N // cand) >= min_grid:
                nbp = cand
                break
    G = N // nbp
    group_bytes = nbp * C * HW * itemsize
    max_nbg = max(1, min(G, target_block_bytes // max(group_bytes, 1)))
    nbg = 1
    for cand in range(max_nbg, 0, -1):
        if G % cand == 0 and (G // cand) >= min_grid:
            nbg = cand
            break
    return nbp, nbg, G


def feedforward_pallas(x_nchw, w1, dw, w2):
    """x_nchw: (N, C, H, W); w1, w2: (C, C, 1, 1) OIHW; dw: (C, 1, 3, 3) OIHW."""
    N, C, H, W = x_nchw.shape
    HW = H * W
    itemsize = jnp.dtype(x_nchw.dtype).itemsize

    use_mxu, _ = _mxu_config(C)
    nbp, nbg, G = _choose_layout(N, C, HW, itemsize)
    R = nbp * C

    # Free layout changes (row-major): (N,C,H,W) -> (N,C,HW) -> (G, R, HW);
    # flattened spatial sits on the 128-lane axis, packed channels on sublanes.
    # (Note: stores are unmasked lane-dense vst only when HW % 128 == 0.)
    x3 = x_nchw.reshape(G, R, HW)

    w1m = w1[:, :, 0, 0]
    w2m = w2[:, :, 0, 0]
    dwm = dw[:, 0, :, :].reshape(C, 9)
    if nbp > 1:
        eye = jnp.eye(nbp, dtype=w1m.dtype)
        w1m = jnp.kron(eye, w1m)            # (R, R) block-diagonal
        w2m = jnp.kron(eye, w2m)
        dwm = jnp.tile(dwm, (nbp, 1))       # (R, 9)

    masks = _boundary_masks(H, W)           # (4, HW) f32, grid-invariant

    kernel = functools.partial(_ffn_kernel, W_img=W, use_mxu=use_mxu)

    block_io = nbg * R * HW * itemsize
    resident = ((w1m.size + w2m.size + dwm.size) * jnp.dtype(w1m.dtype).itemsize
                + masks.size * 4)
    vmem_limit = _vmem_limit(block_io, R * HW * 4, resident)

    def _run(single_buffer_weights):
        def wspec(shape):
            idx = lambda g: (0,) * len(shape)
            if single_buffer_weights:
                return pl.BlockSpec(shape, idx, pipeline_mode=pl.Buffered(1))
            return pl.BlockSpec(shape, idx)

        return pl.pallas_call(
            kernel,
            out_shape=jax.ShapeDtypeStruct((G, R, HW), x_nchw.dtype),
            grid_spec=pltpu.PrefetchScalarGridSpec(
                num_scalar_prefetch=0,
                grid=(G // nbg,),
                in_specs=[
                    pl.BlockSpec((nbg, R, HW), lambda g: (g, 0, 0)),
                    wspec((R, R)),
                    wspec((R, 9)),
                    wspec((R, R)),
                    wspec((4, HW)),
                ],
                out_specs=pl.BlockSpec((nbg, R, HW), lambda g: (g, 0, 0)),
            ),
            compiler_params=pltpu.CompilerParams(
                dimension_semantics=("parallel",),
                vmem_limit_bytes=vmem_limit),
        )(x3, w1m, dwm, w2m, masks)

    # TODO(synk): when a single (R, HW) group approaches VMEM (v7x: 64 MiB/TC),
    # add a second parallel grid axis tiling H into row blocks with a 1-row halo
    # instead of holding the whole row-group slab per step.
    try:
        out3 = _run(single_buffer_weights=True)
    except Exception:
        # pipeline_mode / Buffered(1) unsupported on this JAX version:
        # fall back to default (double-buffered) weight blocks.
        out3 = _run(single_buffer_weights=False)

    return out3.reshape(N, C, H, W)


def feedforward_ref(x, w1, dw, w2):
    """Pure-JAX reference mirroring the PyTorch module (NCHW)."""
    dn = ("NCHW", "OIHW", "NCHW")
    y = lax.conv_general_dilated(x, w1, (1, 1), "VALID", dimension_numbers=dn)
    y = _leaky_relu(y)
    y = lax.conv_general_dilated(y, dw, (1, 1), ((1, 1), (1, 1)),
                                 dimension_numbers=dn,
                                 feature_group_count=x.shape[1])
    y = _leaky_relu(y)
    y = lax.conv_general_dilated(y, w2, (1, 1), "VALID", dimension_numbers=dn)
    return y


if __name__ == "__main__":
    N, C, H, W = 2, 4, 16, 16
    key = jax.random.PRNGKey(0)
    kx, k1, kd, k2 = jax.random.split(key, 4)

    x = jax.random.normal(kx, (N, C, H, W), jnp.float32)
    # Deterministic "synthetic checkpoint" weights (shapes from the nn.Conv2d defs).
    w1 = jax.random.normal(k1, (C, C, 1, 1), jnp.float32) * 0.2   # 1x1, bias=False
    dw = jax.random.normal(kd, (C, 1, 3, 3), jnp.float32) * 0.2   # depthwise 3x3, groups=C
    w2 = jax.random.normal(k2, (C, C, 1, 1), jnp.float32) * 0.2   # 1x1, bias=False

    out = jax.block_until_ready(feedforward_pallas(x, w1, dw, w2))
    ref = feedforward_ref(x, w1, dw, w2)
    np.testing.assert_allclose(np.asarray(out), np.asarray(ref),
                               rtol=1e-5, atol=1e-5)

    # bf16 storage path (halves HBM traffic on v6e/v7x); accumulation stays f32.
    xb, w1b, dwb, w2b = (t.astype(jnp.bfloat16) for t in (x, w1, dw, w2))
    outb = jax.block_until_ready(feedforward_pallas(xb, w1b, dwb, w2b))
    refb = feedforward_ref(xb.astype(jnp.float32), w1b.astype(jnp.float32),
                           dwb.astype(jnp.float32), w2b.astype(jnp.float32))
    np.testing.assert_allclose(np.asarray(outb.astype(jnp.float32)),
                               np.asarray(refb), rtol=5e-2, atol=5e-2)

    print("KERNEL_OK")
</pallas_src>

<mosaic_0001>
module attributes {stable_mosaic.version = 11 : i64} {
  func.func @_ffn_kernel(%arg0: i32, %arg1: memref<1x4x256xf32, #tpu.memory_space<vmem>>, %arg2: memref<4x4xf32, #tpu.memory_space<vmem>>, %arg3: memref<4x9xf32, #tpu.memory_space<vmem>>, %arg4: memref<4x4xf32, #tpu.memory_space<vmem>>, %arg5: memref<4x256xf32, #tpu.memory_space<vmem>>, %arg6: memref<1x4x256xf32, #tpu.memory_space<vmem>>) attributes {dimension_semantics = [#tpu.dimension_semantics<parallel>], iteration_bounds = array<i64: 2>, scalar_prefetch = 0 : i64, scratch_operands = 0 : i64, tpu.core_type = #tpu.core_type<tc>, window_params = [{transform_indices = @transform_0, window_bounds = array<i64: 1, 4, 256>}, {pipeline_mode = #tpu.pipeline_mode<synchronous>, transform_indices = @transform_1, window_bounds = array<i64: 4, 4>}, {pipeline_mode = #tpu.pipeline_mode<synchronous>, transform_indices = @transform_2, window_bounds = array<i64: 4, 9>}, {pipeline_mode = #tpu.pipeline_mode<synchronous>, transform_indices = @transform_3, window_bounds = array<i64: 4, 4>}, {pipeline_mode = #tpu.pipeline_mode<synchronous>, transform_indices = @transform_4, window_bounds = array<i64: 4, 256>}, {transform_indices = @transform_5, window_bounds = array<i64: 1, 4, 256>}]} {
    %c0 = arith.constant 0 : index
    %c0_0 = arith.constant 0 : index
    %0 = vector.load %arg2[%c0, %c0_0] : memref<4x4xf32, #tpu.memory_space<vmem>>, vector<4x4xf32>
    %c0_1 = arith.constant 0 : index
    %c0_2 = arith.constant 0 : index
    %1 = vector.load %arg4[%c0_1, %c0_2] : memref<4x4xf32, #tpu.memory_space<vmem>>, vector<4x4xf32>
    %c0_3 = arith.constant 0 : index
    %c0_4 = arith.constant 0 : index
    %2 = vector.load %arg3[%c0_3, %c0_4] : memref<4x9xf32, #tpu.memory_space<vmem>>, vector<4x9xf32>
    %c0_5 = arith.constant 0 : index
    %c0_6 = arith.constant 0 : index
    %3 = vector.load %arg5[%c0_5, %c0_6] : memref<4x256xf32, #tpu.memory_space<vmem>>, vector<4x256xf32>
    %4 = vector.extract_strided_slice %3 {offsets = [0, 0], sizes = [1, 256], strides = [1, 1]} : vector<4x256xf32> to vector<1x256xf32>
    %5 = vector.extract_strided_slice %3 {offsets = [1, 0], sizes = [1, 256], strides = [1, 1]} : vector<4x256xf32> to vector<1x256xf32>
    %6 = vector.extract_strided_slice %3 {offsets = [2, 0], sizes = [1, 256], strides = [1, 1]} : vector<4x256xf32> to vector<1x256xf32>
    %7 = vector.extract_strided_slice %3 {offsets = [3, 0], sizes = [1, 256], strides = [1, 1]} : vector<4x256xf32> to vector<1x256xf32>
    %c0_i32 = arith.constant 0 : i32
    %c1_i32 = arith.constant 1 : i32
    %8 = arith.muli %c0_i32, %c1_i32 : i32
    %c0_i32_7 = arith.constant 0 : i32
    %9 = arith.addi %c0_i32_7, %8 : i32
    %10 = arith.index_cast %9 : i32 to index
    %c0_8 = arith.constant 0 : index
    %c0_9 = arith.constant 0 : index
    %11 = vector.load %arg1[%10, %c0_8, %c0_9] : memref<1x4x256xf32, #tpu.memory_space<vmem>>, vector<1x4x256xf32>
    %12 = vector.shape_cast %11 : vector<1x4x256xf32> to vector<4x256xf32>
    %13 = vector.extract_strided_slice %0 {offsets = [0, 0], sizes = [4, 1], strides = [1, 1]} : vector<4x4xf32> to vector<4x1xf32>
    %14 = vector.extract_strided_slice %12 {offsets = [0, 0], sizes = [1, 256], strides = [1, 1]} : vector<4x256xf32> to vector<1x256xf32>
    %15 = vector.broadcast %13 : vector<4x1xf32> to vector<4x256xf32>
    %16 = vector.broadcast %14 : vector<1x256xf32> to vector<4x256xf32>
    %17 = arith.mulf %15, %16 : vector<4x256xf32>
    %18 = vector.extract_strided_slice %0 {offsets = [0, 1], sizes = [4, 1], strides = [1, 1]} : vector<4x4xf32> to vector<4x1xf32>
    %19 = vector.extract_strided_slice %12 {offsets = [1, 0], sizes = [1, 256], strides = [1, 1]} : vector<4x256xf32> to vector<1x256xf32>
    %20 = vector.broadcast %18 : vector<4x1xf32> to vector<4x256xf32>
    %21 = vector.broadcast %19 : vector<1x256xf32> to vector<4x256xf32>
    %22 = arith.mulf %20, %21 : vector<4x256xf32>
    %23 = vector.extract_strided_slice %0 {offsets = [0, 2], sizes = [4, 1], strides = [1, 1]} : vector<4x4xf32> to vector<4x1xf32>
    %24 = vector.extract_strided_slice %12 {offsets = [2, 0], sizes = [1, 256], strides = [1, 1]} : vector<4x256xf32> to vector<1x256xf32>
    %25 = vector.broadcast %23 : vector<4x1xf32> to vector<4x256xf32>
    %26 = vector.broadcast %24 : vector<1x256xf32> to vector<4x256xf32>
    %27 = arith.mulf %25, %26 : vector<4x256xf32>
    %28 = arith.addf %17, %27 : vector<4x256xf32>
    %29 = vector.extract_strided_slice %0 {offsets = [0, 3], sizes = [4, 1], strides = [1, 1]} : vector<4x4xf32> to vector<4x1xf32>
    %30 = vector.extract_strided_slice %12 {offsets = [3, 0], sizes = [1, 256], strides = [1, 1]} : vector<4x256xf32> to vector<1x256xf32>
    %31 = vector.broadcast %29 : vector<4x1xf32> to vector<4x256xf32>
    %32 = vector.broadcast %30 : vector<1x256xf32> to vector<4x256xf32>
    %33 = arith.mulf %31, %32 : vector<4x256xf32>
    %34 = arith.addf %22, %33 : vector<4x256xf32>
    %35 = arith.addf %28, %34 : vector<4x256xf32>
    %cst = arith.constant 0.000000e+00 : f32
    %36 = vector.broadcast %cst : f32 to vector<4x256xf32>
    %37 = arith.cmpf oge, %35, %36 : vector<4x256xf32>
    %cst_10 = arith.constant 1.000000e-01 : f32
    %38 = vector.broadcast %cst_10 : f32 to vector<4x256xf32>
    %39 = arith.mulf %38, %35 : vector<4x256xf32>
    %40 = arith.select %37, %35, %39 : vector<4x256xi1>, vector<4x256xf32>
    %c1_i32_11 = arith.constant 1 : i32
    %41 = tpu.dynamic_rotate %40 by %c1_i32_11 dim 1 : vector<4x256xf32>, i32 -> vector<4x256xf32>
    %42 = vector.broadcast %4 : vector<1x256xf32> to vector<4x256xf32>
    %43 = arith.mulf %41, %42 : vector<4x256xf32>
    %c255_i32 = arith.constant 255 : i32
    %44 = tpu.dynamic_rotate %40 by %c255_i32 dim 1 : vector<4x256xf32>, i32 -> vector<4x256xf32>
    %45 = vector.broadcast %5 : vector<1x256xf32> to vector<4x256xf32>
    %46 = arith.mulf %44, %45 : vector<4x256xf32>
    %47 = vector.extract_strided_slice %2 {offsets = [0, 0], sizes = [4, 1], strides = [1, 1]} : vector<4x9xf32> to vector<4x1xf32>
    %48 = vector.broadcast %47 : vector<4x1xf32> to vector<4x256xf32>
    %49 = arith.mulf %48, %43 : vector<4x256xf32>
    %50 = vector.extract_strided_slice %2 {offsets = [0, 1], sizes = [4, 1], strides = [1, 1]} : vector<4x9xf32> to vector<4x1xf32>
    %51 = vector.broadcast %50 : vector<4x1xf32> to vector<4x256xf32>
    %52 = arith.mulf %51, %40 : vector<4x256xf32>
    %53 = arith.addf %49, %52 : vector<4x256xf32>
    %54 = vector.extract_strided_slice %2 {offsets = [0, 2], sizes = [4, 1], strides = [1, 1]} : vector<4x9xf32> to vector<4x1xf32>
    %55 = vector.broadcast %54 : vector<4x1xf32> to vector<4x256xf32>
    %56 = arith.mulf %55, %46 : vector<4x256xf32>
    %57 = arith.addf %53, %56 : vector<4x256xf32>
    %58 = vector.extract_strided_slice %2 {offsets = [0, 3], sizes = [4, 1], strides = [1, 1]} : vector<4x9xf32> to vector<4x1xf32>
    %59 = vector.broadcast %58 : vector<4x1xf32> to vector<4x256xf32>
    %60 = arith.mulf %59, %43 : vector<4x256xf32>
    %61 = vector.extract_strided_slice %2 {offsets = [0, 4], sizes = [4, 1], strides = [1, 1]} : vector<4x9xf32> to vector<4x1xf32>
    %62 = vector.broadcast %61 : vector<4x1xf32> to vector<4x256xf32>
    %63 = arith.mulf %62, %40 : vector<4x256xf32>
    %64 = arith.addf %60, %63 : vector<4x256xf32>
    %65 = vector.extract_strided_slice %2 {offsets = [0, 5], sizes = [4, 1], strides = [1, 1]} : vector<4x9xf32> to vector<4x1xf32>
    %66 = vector.broadcast %65 : vector<4x1xf32> to vector<4x256xf32>
    %67 = arith.mulf %66, %46 : vector<4x256xf32>
    %68 = arith.addf %64, %67 : vector<4x256xf32>
    %69 = vector.extract_strided_slice %2 {offsets = [0, 6], sizes = [4, 1], strides = [1, 1]} : vector<4x9xf32> to vector<4x1xf32>
    %70 = vector.broadcast %69 : vector<4x1xf32> to vector<4x256xf32>
    %71 = arith.mulf %70, %43 : vector<4x256xf32>
    %72 = vector.extract_strided_slice %2 {offsets = [0, 7], sizes = [4, 1], strides = [1, 1]} : vector<4x9xf32> to vector<4x1xf32>
    %73 = vector.broadcast %72 : vector<4x1xf32> to vector<4x256xf32>
    %74 = arith.mulf %73, %40 : vector<4x256xf32>
    %75 = arith.addf %71, %74 : vector<4x256xf32>
    %76 = vector.extract_strided_slice %2 {offsets = [0, 8], sizes = [4, 1], strides = [1, 1]} : vector<4x9xf32> to vector<4x1xf32>
    %77 = vector.broadcast %76 : vector<4x1xf32> to vector<4x256xf32>
    %78 = arith.mulf %77, %46 : vector<4x256xf32>
    %79 = arith.addf %75, %78 : vector<4x256xf32>
    %c16_i32 = arith.constant 16 : i32
    %80 = tpu.dynamic_rotate %57 by %c16_i32 dim 1 : vector<4x256xf32>, i32 -> vector<4x256xf32>
    %81 = vector.broadcast %6 : vector<1x256xf32> to vector<4x256xf32>
    %82 = arith.mulf %80, %81 : vector<4x256xf32>
    %c240_i32 = arith.constant 240 : i32
    %83 = tpu.dynamic_rotate %79 by %c240_i32 dim 1 : vector<4x256xf32>, i32 -> vector<4x256xf32>
    %84 = vector.broadcast %7 : vector<1x256xf32> to vector<4x256xf32>
    %85 = arith.mulf %83, %84 : vector<4x256xf32>
    %86 = arith.addf %68, %82 : vector<4x256xf32>
    %87 = arith.addf %86, %85 : vector<4x256xf32>
    %cst_12 = arith.constant 0.000000e+00 : f32
    %88 = vector.broadcast %cst_12 : f32 to vector<4x256xf32>
    %89 = arith.cmpf oge, %87, %88 : vector<4x256xf32>
    %cst_13 = arith.constant 1.000000e-01 : f32
    %90 = vector.broadcast %cst_13 : f32 to vector<4x256xf32>
    %91 = arith.mulf %90, %87 : vector<4x256xf32>
    %92 = arith.select %89, %87, %91 : vector<4x256xi1>, vector<4x256xf32>
    %93 = vector.extract_strided_slice %1 {offsets = [0, 0], sizes = [4, 1], strides = [1, 1]} : vector<4x4xf32> to vector<4x1xf32>
    %94 = vector.extract_strided_slice %92 {offsets = [0, 0], sizes = [1, 256], strides = [1, 1]} : vector<4x256xf32> to vector<1x256xf32>
    %95 = vector.broadcast %93 : vector<4x1xf32> to vector<4x256xf32>
    %96 = vector.broadcast %94 : vector<1x256xf32> to vector<4x256xf32>
    %97 = arith.mulf %95, %96 : vector<4x256xf32>
    %98 = vector.extract_strided_slice %1 {offsets = [0, 1], sizes = [4, 1], strides = [1, 1]} : vector<4x4xf32> to vector<4x1xf32>
    %99 = vector.extract_strided_slice %92 {offsets = [1, 0], sizes = [1, 256], strides = [1, 1]} : vector<4x256xf32> to vector<1x256xf32>
    %100 = vector.broadcast %98 : vector<4x1xf32> to vector<4x256xf32>
    %101 = vector.broadcast %99 : vector<1x256xf32> to vector<4x256xf32>
    %102 = arith.mulf %100, %101 : vector<4x256xf32>
    %103 = vector.extract_strided_slice %1 {offsets = [0, 2], sizes = [4, 1], strides = [1, 1]} : vector<4x4xf32> to vector<4x1xf32>
    %104 = vector.extract_strided_slice %92 {offsets = [2, 0], sizes = [1, 256], strides = [1, 1]} : vector<4x256xf32> to vector<1x256xf32>
    %105 = vector.broadcast %103 : vector<4x1xf32> to vector<4x256xf32>
    %106 = vector.broadcast %104 : vector<1x256xf32> to vector<4x256xf32>
    %107 = arith.mulf %105, %106 : vector<4x256xf32>
    %108 = arith.addf %97, %107 : vector<4x256xf32>
    %109 = vector.extract_strided_slice %1 {offsets = [0, 3], sizes = [4, 1], strides = [1, 1]} : vector<4x4xf32> to vector<4x1xf32>
    %110 = vector.extract_strided_slice %92 {offsets = [3, 0], sizes = [1, 256], strides = [1, 1]} : vector<4x256xf32> to vector<1x256xf32>
    %111 = vector.broadcast %109 : vector<4x1xf32> to vector<4x256xf32>
    %112 = vector.broadcast %110 : vector<1x256xf32> to vector<4x256xf32>
    %113 = arith.mulf %111, %112 : vector<4x256xf32>
    %114 = arith.addf %102, %113 : vector<4x256xf32>
    %115 = arith.addf %108, %114 : vector<4x256xf32>
    %116 = arith.index_cast %9 : i32 to index
    %c0_14 = arith.constant 0 : index
    %c0_15 = arith.constant 0 : index
    %117 = vector.load %arg6[%116, %c0_14, %c0_15] : memref<1x4x256xf32, #tpu.memory_space<vmem>>, vector<1x4x256xf32>
    %118 = vector.shape_cast %117 : vector<1x4x256xf32> to vector<4x256xf32>
    %119 = vector.shape_cast %115 : vector<4x256xf32> to vector<1x4x256xf32>
    tpu.vector_store %arg6[%116, %c0_14, %c0_15], %119 {strides = array<i32>} : memref<1x4x256xf32, #tpu.memory_space<vmem>>, vector<1x4x256xf32>,
    %c1_i32_16 = arith.constant 1 : i32
    return
  }
  func.func @transform_0(%arg0: i32) -> (i32, i32, i32) {
    %c0_i32 = arith.constant 0 : i32
    %c0_i32_0 = arith.constant 0 : i32
    %c0_i32_1 = arith.constant 0 : i32
    return %arg0, %c0_i32, %c0_i32_0 : i32, i32, i32
  }
  func.func @transform_1(%arg0: i32) -> (i32, i32) {
    %c0_i32 = arith.constant 0 : i32
    %c0_i32_0 = arith.constant 0 : i32
    %c0_i32_1 = arith.constant 0 : i32
    return %c0_i32, %c0_i32_0 : i32, i32
  }
  func.func @transform_2(%arg0: i32) -> (i32, i32) {
    %c0_i32 = arith.constant 0 : i32
    %c0_i32_0 = arith.constant 0 : i32
    %c0_i32_1 = arith.constant 0 : i32
    return %c0_i32, %c0_i32_0 : i32, i32
  }
  func.func @transform_3(%arg0: i32) -> (i32, i32) {
    %c0_i32 = arith.constant 0 : i32
    %c0_i32_0 = arith.constant 0 : i32
    %c0_i32_1 = arith.constant 0 : i32
    return %c0_i32, %c0_i32_0 : i32, i32
  }
  func.func @transform_4(%arg0: i32) -> (i32, i32) {
    %c0_i32 = arith.constant 0 : i32
    %c0_i32_0 = arith.constant 0 : i32
    %c0_i32_1 = arith.constant 0 : i32
    return %c0_i32, %c0_i32_0 : i32, i32
  }
  func.func @transform_5(%arg0: i32) -> (i32, i32, i32) {
    %c0_i32 = arith.constant 0 : i32
    %c0_i32_0 = arith.constant 0 : i32
    %c0_i32_1 = arith.constant 0 : i32
    return %arg0, %c0_i32, %c0_i32_0 : i32, i32, i32
  }
}

module attributes {stable_mosaic.version = 11 : i64} {
  func.func @_ffn_kernel(%arg0: i32, %arg1: memref<1x4x256xf32, #tpu.memory_space<vmem>>, %arg2: memref<4x4xf32, #tpu.memory_space<vmem>>, %arg3: memref<4x9xf32, #tpu.memory_space<vmem>>, %arg4: memref<4x4xf32, #tpu.memory_space<vmem>>, %arg5: memref<4x256xf32, #tpu.memory_space<vmem>>, %arg6: memref<1x4x256xf32, #tpu.memory_space<vmem>>) attributes {dimension_semantics = [#tpu.dimension_semantics<parallel>], iteration_bounds = array<i64: 2>, scalar_prefetch = 0 : i64, scratch_operands = 0 : i64, tpu.core_type = #tpu.core_type<tc>, window_params = [{transform_indices = @transform_0, window_bounds = array<i64: 1, 4, 256>}, {pipeline_mode = #tpu.pipeline_mode<synchronous>, transform_indices = @transform_1, window_bounds = array<i64: 4, 4>}, {pipeline_mode = #tpu.pipeline_mode<synchronous>, transform_indices = @transform_2, window_bounds = array<i64: 4, 9>}, {pipeline_mode = #tpu.pipeline_mode<synchronous>, transform_indices = @transform_3, window_bounds = array<i64: 4, 4>}, {pipeline_mode = #tpu.pipeline_mode<synchronous>, transform_indices = @transform_4, window_bounds = array<i64: 4, 256>}, {transform_indices = @transform_5, window_bounds = array<i64: 1, 4, 256>}]} {
    %c0 = arith.constant 0 : index
    %c0_0 = arith.constant 0 : index
    %0 = vector.load %arg2[%c0, %c0_0] : memref<4x4xf32, #tpu.memory_space<vmem>>, vector<4x4xf32>
    %c0_1 = arith.constant 0 : index
    %c0_2 = arith.constant 0 : index
    %1 = vector.load %arg4[%c0_1, %c0_2] : memref<4x4xf32, #tpu.memory_space<vmem>>, vector<4x4xf32>
    %c0_3 = arith.constant 0 : index
    %c0_4 = arith.constant 0 : index
    %2 = vector.load %arg3[%c0_3, %c0_4] : memref<4x9xf32, #tpu.memory_space<vmem>>, vector<4x9xf32>
    %c0_5 = arith.constant 0 : index
    %c0_6 = arith.constant 0 : index
    %3 = vector.load %arg5[%c0_5, %c0_6] : memref<4x256xf32, #tpu.memory_space<vmem>>, vector<4x256xf32>
    %4 = vector.extract_strided_slice %3 {offsets = [0, 0], sizes = [1, 256], strides = [1, 1]} : vector<4x256xf32> to vector<1x256xf32>
    %5 = vector.extract_strided_slice %3 {offsets = [1, 0], sizes = [1, 256], strides = [1, 1]} : vector<4x256xf32> to vector<1x256xf32>
    %6 = vector.extract_strided_slice %3 {offsets = [2, 0], sizes = [1, 256], strides = [1, 1]} : vector<4x256xf32> to vector<1x256xf32>
    %7 = vector.extract_strided_slice %3 {offsets = [3, 0], sizes = [1, 256], strides = [1, 1]} : vector<4x256xf32> to vector<1x256xf32>
    %c0_i32 = arith.constant 0 : i32
    %c1_i32 = arith.constant 1 : i32
    %8 = arith.muli %c0_i32, %c1_i32 : i32
    %c0_i32_7 = arith.constant 0 : i32
    %9 = arith.addi %c0_i32_7, %8 : i32
    %10 = arith.index_cast %9 : i32 to index
    %c0_8 = arith.constant 0 : index
    %c0_9 = arith.constant 0 : index
    %11 = vector.load %arg1[%10, %c0_8, %c0_9] : memref<1x4x256xf32, #tpu.memory_space<vmem>>, vector<1x4x256xf32>
    %12 = vector.shape_cast %11 : vector<1x4x256xf32> to vector<4x256xf32>
    %13 = vector.extract_strided_slice %0 {offsets = [0, 0], sizes = [4, 1], strides = [1, 1]} : vector<4x4xf32> to vector<4x1xf32>
    %14 = vector.extract_strided_slice %12 {offsets = [0, 0], sizes = [1, 256], strides = [1, 1]} : vector<4x256xf32> to vector<1x256xf32>
    %15 = vector.broadcast %13 : vector<4x1xf32> to vector<4x256xf32>
    %16 = vector.broadcast %14 : vector<1x256xf32> to vector<4x256xf32>
    %17 = arith.mulf %15, %16 : vector<4x256xf32>
    %18 = vector.extract_strided_slice %0 {offsets = [0, 1], sizes = [4, 1], strides = [1, 1]} : vector<4x4xf32> to vector<4x1xf32>
    %19 = vector.extract_strided_slice %12 {offsets = [1, 0], sizes = [1, 256], strides = [1, 1]} : vector<4x256xf32> to vector<1x256xf32>
    %20 = vector.broadcast %18 : vector<4x1xf32> to vector<4x256xf32>
    %21 = vector.broadcast %19 : vector<1x256xf32> to vector<4x256xf32>
    %22 = arith.mulf %20, %21 : vector<4x256xf32>
    %23 = vector.extract_strided_slice %0 {offsets = [0, 2], sizes = [4, 1], strides = [1, 1]} : vector<4x4xf32> to vector<4x1xf32>
    %24 = vector.extract_strided_slice %12 {offsets = [2, 0], sizes = [1, 256], strides = [1, 1]} : vector<4x256xf32> to vector<1x256xf32>
    %25 = vector.broadcast %23 : vector<4x1xf32> to vector<4x256xf32>
    %26 = vector.broadcast %24 : vector<1x256xf32> to vector<4x256xf32>
    %27 = arith.mulf %25, %26 : vector<4x256xf32>
    %28 = arith.addf %17, %27 : vector<4x256xf32>
    %29 = vector.extract_strided_slice %0 {offsets = [0, 3], sizes = [4, 1], strides = [1, 1]} : vector<4x4xf32> to vector<4x1xf32>
    %30 = vector.extract_strided_slice %12 {offsets = [3, 0], sizes = [1, 256], strides = [1, 1]} : vector<4x256xf32> to vector<1x256xf32>
    %31 = vector.broadcast %29 : vector<4x1xf32> to vector<4x256xf32>
    %32 = vector.broadcast %30 : vector<1x256xf32> to vector<4x256xf32>
    %33 = arith.mulf %31, %32 : vector<4x256xf32>
    %34 = arith.addf %22, %33 : vector<4x256xf32>
    %35 = arith.addf %28, %34 : vector<4x256xf32>
    %cst = arith.constant 0.000000e+00 : f32
    %36 = vector.broadcast %cst : f32 to vector<4x256xf32>
    %37 = arith.cmpf oge, %35, %36 : vector<4x256xf32>
    %cst_10 = arith.constant 1.000000e-01 : f32
    %38 = vector.broadcast %cst_10 : f32 to vector<4x256xf32>
    %39 = arith.mulf %38, %35 : vector<4x256xf32>
    %40 = arith.select %37, %35, %39 : vector<4x256xi1>, vector<4x256xf32>
    %c1_i32_11 = arith.constant 1 : i32
    %41 = tpu.dynamic_rotate %40 by %c1_i32_11 dim 1 : vector<4x256xf32>, i32 -> vector<4x256xf32>
    %42 = vector.broadcast %4 : vector<1x256xf32> to vector<4x256xf32>
    %43 = arith.mulf %41, %42 : vector<4x256xf32>
    %c255_i32 = arith.constant 255 : i32
    %44 = tpu.dynamic_rotate %40 by %c255_i32 dim 1 : vector<4x256xf32>, i32 -> vector<4x256xf32>
    %45 = vector.broadcast %5 : vector<1x256xf32> to vector<4x256xf32>
    %46 = arith.mulf %44, %45 : vector<4x256xf32>
    %47 = vector.extract_strided_slice %2 {offsets = [0, 0], sizes = [4, 1], strides = [1, 1]} : vector<4x9xf32> to vector<4x1xf32>
    %48 = vector.broadcast %47 : vector<4x1xf32> to vector<4x256xf32>
    %49 = arith.mulf %48, %43 : vector<4x256xf32>
    %50 = vector.extract_strided_slice %2 {offsets = [0, 1], sizes = [4, 1], strides = [1, 1]} : vector<4x9xf32> to vector<4x1xf32>
    %51 = vector.broadcast %50 : vector<4x1xf32> to vector<4x256xf32>
    %52 = arith.mulf %51, %40 : vector<4x256xf32>
    %53 = arith.addf %49, %52 : vector<4x256xf32>
    %54 = vector.extract_strided_slice %2 {offsets = [0, 2], sizes = [4, 1], strides = [1, 1]} : vector<4x9xf32> to vector<4x1xf32>
    %55 = vector.broadcast %54 : vector<4x1xf32> to vector<4x256xf32>
    %56 = arith.mulf %55, %46 : vector<4x256xf32>
    %57 = arith.addf %53, %56 : vector<4x256xf32>
    %58 = vector.extract_strided_slice %2 {offsets = [0, 3], sizes = [4, 1], strides = [1, 1]} : vector<4x9xf32> to vector<4x1xf32>
    %59 = vector.broadcast %58 : vector<4x1xf32> to vector<4x256xf32>
    %60 = arith.mulf %59, %43 : vector<4x256xf32>
    %61 = vector.extract_strided_slice %2 {offsets = [0, 4], sizes = [4, 1], strides = [1, 1]} : vector<4x9xf32> to vector<4x1xf32>
    %62 = vector.broadcast %61 : vector<4x1xf32> to vector<4x256xf32>
    %63 = arith.mulf %62, %40 : vector<4x256xf32>
    %64 = arith.addf %60, %63 : vector<4x256xf32>
    %65 = vector.extract_strided_slice %2 {offsets = [0, 5], sizes = [4, 1], strides = [1, 1]} : vector<4x9xf32> to vector<4x1xf32>
    %66 = vector.broadcast %65 : vector<4x1xf32> to vector<4x256xf32>
    %67 = arith.mulf %66, %46 : vector<4x256xf32>
    %68 = arith.addf %64, %67 : vector<4x256xf32>
    %69 = vector.extract_strided_slice %2 {offsets = [0, 6], sizes = [4, 1], strides = [1, 1]} : vector<4x9xf32> to vector<4x1xf32>
    %70 = vector.broadcast %69 : vector<4x1xf32> to vector<4x256xf32>
    %71 = arith.mulf %70, %43 : vector<4x256xf32>
    %72 = vector.extract_strided_slice %2 {offsets = [0, 7], sizes = [4, 1], strides = [1, 1]} : vector<4x9xf32> to vector<4x1xf32>
    %73 = vector.broadcast %72 : vector<4x1xf32> to vector<4x256xf32>
    %74 = arith.mulf %73, %40 : vector<4x256xf32>
    %75 = arith.addf %71, %74 : vector<4x256xf32>
    %76 = vector.extract_strided_slice %2 {offsets = [0, 8], sizes = [4, 1], strides = [1, 1]} : vector<4x9xf32> to vector<4x1xf32>
    %77 = vector.broadcast %76 : vector<4x1xf32> to vector<4x256xf32>
    %78 = arith.mulf %77, %46 : vector<4x256xf32>
    %79 = arith.addf %75, %78 : vector<4x256xf32>
    %c16_i32 = arith.constant 16 : i32
    %80 = tpu.dynamic_rotate %57 by %c16_i32 dim 1 : vector<4x256xf32>, i32 -> vector<4x256xf32>
    %81 = vector.broadcast %6 : vector<1x256xf32> to vector<4x256xf32>
    %82 = arith.mulf %80, %81 : vector<4x256xf32>
    %c240_i32 = arith.constant 240 : i32
    %83 = tpu.dynamic_rotate %79 by %c240_i32 dim 1 : vector<4x256xf32>, i32 -> vector<4x256xf32>
    %84 = vector.broadcast %7 : vector<1x256xf32> to vector<4x256xf32>
    %85 = arith.mulf %83, %84 : vector<4x256xf32>
    %86 = arith.addf %68, %82 : vector<4x256xf32>
    %87 = arith.addf %86, %85 : vector<4x256xf32>
    %cst_12 = arith.constant 0.000000e+00 : f32
    %88 = vector.broadcast %cst_12 : f32 to vector<4x256xf32>
    %89 = arith.cmpf oge, %87, %88 : vector<4x256xf32>
    %cst_13 = arith.constant 1.000000e-01 : f32
    %90 = vector.broadcast %cst_13 : f32 to vector<4x256xf32>
    %91 = arith.mulf %90, %87 : vector<4x256xf32>
    %92 = arith.select %89, %87, %91 : vector<4x256xi1>, vector<4x256xf32>
    %93 = vector.extract_strided_slice %1 {offsets = [0, 0], sizes = [4, 1], strides = [1, 1]} : vector<4x4xf32> to vector<4x1xf32>
    %94 = vector.extract_strided_slice %92 {offsets = [0, 0], sizes = [1, 256], strides = [1, 1]} : vector<4x256xf32> to vector<1x256xf32>
    %95 = vector.broadcast %93 : vector<4x1xf32> to vector<4x256xf32>
    %96 = vector.broadcast %94 : vector<1x256xf32> to vector<4x256xf32>
    %97 = arith.mulf %95, %96 : vector<4x256xf32>
    %98 = vector.extract_strided_slice %1 {offsets = [0, 1], sizes = [4, 1], strides = [1, 1]} : vector<4x4xf32> to vector<4x1xf32>
    %99 = vector.extract_strided_slice %92 {offsets = [1, 0], sizes = [1, 256], strides = [1, 1]} : vector<4x256xf32> to vector<1x256xf32>
    %100 = vector.broadcast %98 : vector<4x1xf32> to vector<4x256xf32>
    %101 = vector.broadcast %99 : vector<1x256xf32> to vector<4x256xf32>
    %102 = arith.mulf %100, %101 : vector<4x256xf32>
    %103 = vector.extract_strided_slice %1 {offsets = [0, 2], sizes = [4, 1], strides = [1, 1]} : vector<4x4xf32> to vector<4x1xf32>
    %104 = vector.extract_strided_slice %92 {offsets = [2, 0], sizes = [1, 256], strides = [1, 1]} : vector<4x256xf32> to vector<1x256xf32>
    %105 = vector.broadcast %103 : vector<4x1xf32> to vector<4x256xf32>
    %106 = vector.broadcast %104 : vector<1x256xf32> to vector<4x256xf32>
    %107 = arith.mulf %105, %106 : vector<4x256xf32>
    %108 = arith.addf %97, %107 : vector<4x256xf32>
    %109 = vector.extract_strided_slice %1 {offsets = [0, 3], sizes = [4, 1], strides = [1, 1]} : vector<4x4xf32> to vector<4x1xf32>
    %110 = vector.extract_strided_slice %92 {offsets = [3, 0], sizes = [1, 256], strides = [1, 1]} : vector<4x256xf32> to vector<1x256xf32>
    %111 = vector.broadcast %109 : vector<4x1xf32> to vector<4x256xf32>
    %112 = vector.broadcast %110 : vector<1x256xf32> to vector<4x256xf32>
    %113 = arith.mulf %111, %112 : vector<4x256xf32>
    %114 = arith.addf %102, %113 : vector<4x256xf32>
    %115 = arith.addf %108, %114 : vector<4x256xf32>
    %116 = arith.index_cast %9 : i32 to index
    %c0_14 = arith.constant 0 : index
    %c0_15 = arith.constant 0 : index
    %117 = vector.load %arg6[%116, %c0_14, %c0_15] : memref<1x4x256xf32, #tpu.memory_space<vmem>>, vector<1x4x256xf32>
    %118 = vector.shape_cast %117 : vector<1x4x256xf32> to vector<4x256xf32>
    %119 = vector.shape_cast %115 : vector<4x256xf32> to vector<1x4x256xf32>
    tpu.vector_store %arg6[%116, %c0_14, %c0_15], %119 {strides = array<i32>} : memref<1x4x256xf32, #tpu.memory_space<vmem>>, vector<1x4x256xf32>,
    %c1_i32_16 = arith.constant 1 : i32
    return
  }
  func.func @transform_0(%arg0: i32) -> (i32, i32, i32) {
    %c0_i32 = arith.constant 0 : i32
    %c0_i32_0 = arith.constant 0 : i32
    %c0_i32_1 = arith.constant 0 : i32
    return %arg0, %c0_i32, %c0_i32_0 : i32, i32, i32
  }
  func.func @transform_1(%arg0: i32) -> (i32, i32) {
    %c0_i32 = arith.constant 0 : i32
    %c0_i32_0 = arith.constant 0 : i32
    %c0_i32_1 = arith.constant 0 : i32
    return %c0_i32, %c0_i32_0 : i32, i32
  }
  func.func @transform_2(%arg0: i32) -> (i32, i32) {
    %c0_i32 = arith.constant 0 : i32
    %c0_i32_0 = arith.constant 0 : i32
    %c0_i32_1 = arith.constant 0 : i32
    return %c0_i32, %c0_i32_0 : i32, i32
  }
  func.func @transform_3(%arg0: i32) -> (i32, i32) {
    %c0_i32 = arith.constant 0 : i32
    %c0_i32_0 = arith.constant 0 : i32
    %c0_i32_1 = arith.constant 0 : i32
    return %c0_i32, %c0_i32_0 : i32, i32
  }
  func.func @transform_4(%arg0: i32) -> (i32, i32) {
    %c0_i32 = arith.constant 0 : i32
    %c0_i32_0 = arith.constant 0 : i32
    %c0_i32_1 = arith.constant 0 : i32
    return %c0_i32, %c0_i32_0 : i32, i32
  }
  func.func @transform_5(%arg0: i32) -> (i32, i32, i32) {
    %c0_i32 = arith.constant 0 : i32
    %c0_i32_0 = arith.constant 0 : i32
    %c0_i32_1 = arith.constant 0 : i32
    return %arg0, %c0_i32, %c0_i32_0 : i32, i32, i32
  }
}

</mosaic_0001>

<llo_original>
// kernel: tpu_custom_call.1
$region0: #{tpu_custom_call.1}
  #allocation0 [shape = 'u32[]', space=smem, size = 0x4, offset = 0x4, fixed_abs, tag = 'smem constant byte address 0x4 - core index']
  #allocation1 [shape = 'u32[144,128]{1,0:T(1,128)}', space=vmem, size = 0x12000, scoped, tag = 'internal scratch']
  %s0 = inlined_call_operand.hbm [shape: f32[2,4,256], index: 0, kind: input, shape index: {}]
  %s1 = inlined_call_operand.hbm [shape: f32[4,4], index: 1, kind: input, shape index: {}]
  %s2 = inlined_call_operand.hbm [shape: f32[4,9], index: 2, kind: input, shape index: {}]
  %s3 = inlined_call_operand.vmem [shape: f32[4,4], index: 3, kind: input, shape index: {}]
  %s4 = inlined_call_operand.hbm [shape: f32[4,256], index: 4, kind: input, shape index: {}]
  %s5 = inlined_call_operand.hbm [shape: f32[2,4,256], index: 5, kind: output, shape index: {}]
  %s6 = sld [smem:[#allocation0]]
  $region69: #{tpu_custom_call.1} parent=0
    _
  %s8 = ssub.s32 1, %s6
  %s9 = scalar_select 0, %s8, %s6
  $region1: #{tpu_custom_call.1} parent=0
    #allocation2 [shape = 'u8[8192]{0}', space=vmem, size = 0x2000, scoped, tag = 'input window, operand 0']
    #allocation3 [shape = 's32[2]{0}', space=sflag, size = 0x8, scoped, tag = 'scoped memory for tpu_custom_call.1']
    #allocation4 [shape = 's32[2]{0}', space=sflag, size = 0x8, scoped, tag = 'scoped memory for tpu_custom_call.1']
    #allocation5 [shape = 'u8[2048]{0}', space=vmem, size = 0x800, scoped, tag = 'input window, operand 1, single buffered']
    #allocation6 [shape = 's32[1]{0}', space=sflag, size = 0x4, scoped, tag = 'scoped memory for tpu_custom_call.1']
    #allocation7 [shape = 'u8[2048]{0}', space=vmem, size = 0x800, scoped, tag = 'input window, operand 2, single buffered']
    #allocation8 [shape = 'u8[4096]{0}', space=vmem, size = 0x1000, scoped, tag = 'input window, operand 4, single buffered']
    #allocation9 [shape = 's32[1]{0}', space=sflag, size = 0x4, scoped, tag = 'scoped memory for tpu_custom_call.1']
    #allocation10 [shape = 'u8[8192]{0}', space=vmem, size = 0x2000, scoped, tag = 'output window, operand 0']
    %10 = vsyncpa [#allocation3], 0
    %s11 = scalar_lea.sflag [#allocation3], 1
    %12 = vsyncpa %s11, 0
    %13 = vsyncpa [#allocation6], 0
    %14 = vsyncpa [#allocation9], 0
    %15 = vsyncpa [#allocation4], 0
    %s16 = scalar_lea.sflag [#allocation4], 1
    %17 = vsyncpa %s16, 0
    loop: start=0, step=1, limit=4
    $region2: #{tpu_custom_call.1} parent=1 // loop_pre_header
      _
    $region3: #{tpu_custom_call.1} parent=1 // loop_header
      %s19 = sphi 0, %s23
      %p20 = scmp.ge.s32.totalorder %s19, 4
      %s29 = sphi 0, %s31
      %s32 = sphi 0, %s29
      %s33 = sphi 0, %s32
      %s49 = sphi 0, %s33
      %s53 = sphi 0, %s53
      %s55 = sphi 0, %s53
      %s56 = sphi 0, %s55
      %s70 = sphi 0, %s56
      %s74 = sphi 0, %s74
      %s76 = sphi 0, %s74
      %s77 = sphi 0, %s76
      %s91 = sphi 0, %s77
      %s95 = sphi 0, %s95
      %s97 = sphi 0, %s95
      %s98 = sphi 0, %s97
      %s112 = sphi 0, %s98
      %s116 = sphi 0, %s116
      %s118 = sphi 0, %s116
      %s119 = sphi 0, %s118
      %s133 = sphi 0, %s119
      %s139 = sphi 0, %s141
      %s142 = sphi 0, %s139
      %s143 = sphi 0, %s142
      %s159 = sphi 0, %s143
    $region4: #{tpu_custom_call.1} parent=1 // loop_header_branch
      %22 = sbr.rel (%p20) target = $region8
    $region5: #{tpu_custom_call.1} parent=1 // loop_body
      %s24 = ssub.s32 %s19, 1
      %s25 = ssub.s32 %s19, 2
      %s26 = sadd.s32 %s19, 1
      %s27 = ssub.s32 %s19, %s26
      %p28 = scmp.eq.s32.totalorder %s27, 0
      %s30 = sadd.s32 %s29, 1
      %s31 = scalar_select %p28, %s29, %s30
      %p34 = pneg %p28
      %p35 = scmp.eq.s32.totalorder %s19, 1
      %p36 = por %p34, %p35
      %p37 = scmp.ne.s32.totalorder %s29, %s32
      %p38 = scmp.eq.s32.totalorder %s19, 0
      %p39 = por %p37, %p38
      %p40 = scmp.ne.s32.totalorder %s29, %s32
      %p41 = scmp.eq.s32.totalorder %s24, 1
      %p42 = por %p40, %p41
      %p43 = scmp.ne.s32.totalorder %s32, %s33
      %p44 = scmp.eq.s32.totalorder %s24, 0
      %p45 = por %p43, %p44
      %p46 = scmp.ne.s32.totalorder %s32, %s33
      %p47 = scmp.eq.s32.totalorder %s25, 1
      %p48 = por %p46, %p47
      %p50 = scmp.ne.s32.totalorder %s33, %s49
      %p51 = scmp.eq.s32.totalorder %s25, 0
      %p52 = por %p50, %p51
      %s54 = sadd.s32 %s53, 1
      %p57 = scmp.eq.s32.totalorder %s19, 1
      %p58 = scmp.ne.s32.totalorder %s53, %s55
      %p59 = scmp.eq.s32.totalorder %s19, 0
      %p60 = por %p58, %p59
      %p61 = scmp.ne.s32.totalorder %s53, %s55
      %p62 = scmp.eq.s32.totalorder %s24, 1
      %p63 = por %p61, %p62
      %p64 = scmp.ne.s32.totalorder %s55, %s56
      %p65 = scmp.eq.s32.totalorder %s24, 0
      %p66 = por %p64, %p65
      %p67 = scmp.ne.s32.totalorder %s55, %s56
      %p68 = scmp.eq.s32.totalorder %s25, 1
      %p69 = por %p67, %p68
      %p71 = scmp.ne.s32.totalorder %s56, %s70
      %p72 = scmp.eq.s32.totalorder %s25, 0
      %p73 = por %p71, %p72
      %s75 = sadd.s32 %s74, 1
      %p78 = scmp.eq.s32.totalorder %s19, 1
      %p79 = scmp.ne.s32.totalorder %s74, %s76
      %p80 = scmp.eq.s32.totalorder %s19, 0
      %p81 = por %p79, %p80
      %p82 = scmp.ne.s32.totalorder %s74, %s76
      %p83 = scmp.eq.s32.totalorder %s24, 1
      %p84 = por %p82, %p83
      %p85 = scmp.ne.s32.totalorder %s76, %s77
      %p86 = scmp.eq.s32.totalorder %s24, 0
      %p87 = por %p85, %p86
      %p88 = scmp.ne.s32.totalorder %s76, %s77
      %p89 = scmp.eq.s32.totalorder %s25, 1
      %p90 = por %p88, %p89
      %p92 = scmp.ne.s32.totalorder %s77, %s91
      %p93 = scmp.eq.s32.totalorder %s25, 0
      %p94 = por %p92, %p93
      %s96 = sadd.s32 %s95, 1
      %p99 = scmp.eq.s32.totalorder %s19, 1
      %p100 = scmp.ne.s32.totalorder %s95, %s97
      %p101 = scmp.eq.s32.totalorder %s19, 0
      %p102 = por %p100, %p101
      %p103 = scmp.ne.s32.totalorder %s95, %s97
      %p104 = scmp.eq.s32.totalorder %s24, 1
      %p105 = por %p103, %p104
      %p106 = scmp.ne.s32.totalorder %s97, %s98
      %p107 = scmp.eq.s32.totalorder %s24, 0
      %p108 = por %p106, %p107
      %p109 = scmp.ne.s32.totalorder %s97, %s98
      %p110 = scmp.eq.s32.totalorder %s25, 1
      %p111 = por %p109, %p110
      %p113 = scmp.ne.s32.totalorder %s98, %s112
      %p114 = scmp.eq.s32.totalorder %s25, 0
      %p115 = por %p113, %p114
      %s117 = sadd.s32 %s116, 1
      %p120 = scmp.eq.s32.totalorder %s19, 1
      %p121 = scmp.ne.s32.totalorder %s116, %s118
      %p122 = scmp.eq.s32.totalorder %s19, 0
      %p123 = por %p121, %p122
      %p124 = scmp.ne.s32.totalorder %s116, %s118
      %p125 = scmp.eq.s32.totalorder %s24, 1
      %p126 = por %p124, %p125
      %p127 = scmp.ne.s32.totalorder %s118, %s119
      %p128 = scmp.eq.s32.totalorder %s24, 0
      %p129 = por %p127, %p128
      %p130 = scmp.ne.s32.totalorder %s118, %s119
      %p131 = scmp.eq.s32.totalorder %s25, 1
      %p132 = por %p130, %p131
      %p134 = scmp.ne.s32.totalorder %s119, %s133
      %p135 = scmp.eq.s32.totalorder %s25, 0
      %p136 = por %p134, %p135
      %s137 = ssub.s32 %s19, %s26
      %p138 = scmp.eq.s32.totalorder %s137, 0
      %s140 = sadd.s32 %s139, 1
      %s141 = scalar_select %p138, %s139, %s140
      %p144 = pneg %p138
      %p145 = scmp.eq.s32.totalorder %s19, 1
      %p146 = por %p144, %p145
      %p147 = scmp.ne.s32.totalorder %s139, %s142
      %p148 = scmp.eq.s32.totalorder %s19, 0
      %p149 = por %p147, %p148
      %p150 = scmp.ne.s32.totalorder %s139, %s142
      %p151 = scmp.eq.s32.totalorder %s24, 1
      %p152 = por %p150, %p151
      %p153 = scmp.ne.s32.totalorder %s142, %s143
      %p154 = scmp.eq.s32.totalorder %s24, 0
      %p155 = por %p153, %p154
      %p156 = scmp.ne.s32.totalorder %s142, %s143
      %p157 = scmp.eq.s32.totalorder %s25, 1
      %p158 = por %p156, %p157
      %p160 = scmp.ne.s32.totalorder %s143, %s159
      %p161 = scmp.eq.s32.totalorder %s25, 0
      %p162 = por %p160, %p161
      %p163 = scmp.le.s32.totalorder 1, %s19
      %p164 = scmp.lt.s32.totalorder %s19, 3
      %p165 = pnand %p163, %p164
      %p166 = pneg %p165
      // Predicated region
      $region9: #{tpu_custom_call.1} parent=5 // pred_check
        _
      $region10: #{tpu_custom_call.1} parent=5 // pred_check_branch
        %168 = sbr.rel (%p165) target = $region12
      $region11: #{tpu_custom_call.1} parent=5 // pred_region
        %s169 = ssub.s32 %s19, 1
        // Predicated region
        $region13: #{tpu_custom_call.1} parent=11 // pred_check
          %p170 = pneg %p66
        $region14: #{tpu_custom_call.1} parent=11 // pred_check_branch
          %172 = sbr.rel (%p170) target = $region16
        $region15: #{tpu_custom_call.1} parent=11 // pred_region
          %s174 = ssub.s32 64, 64
          %175 = vsyncadd [#allocation6], %s174
          %s177 = sshll.u32 [#allocation5], 4
          %s178 = int_to_ptr.vmem [resolvable:$true] %s177
          %180 = dma.hbm_to_vmem [thread:$0]  %s1, 64, %s178, [#allocation6]
        $region16: #{tpu_custom_call.1} parent=11 // pred_fallthru
          _
        // Predicated region
        $region17: #{tpu_custom_call.1} parent=11 // pred_check
          %p181 = pneg %p87
        $region18: #{tpu_custom_call.1} parent=11 // pred_check_branch
          %183 = sbr.rel (%p181) target = $region20
        $region19: #{tpu_custom_call.1} parent=11 // pred_region
          %s185 = ssub.s32 64, 64
          %186 = vsyncadd [#allocation6], %s185
          %s188 = sshll.u32 [#allocation7], 4
          %s189 = int_to_ptr.vmem [resolvable:$true] %s188
          %191 = dma.hbm_to_vmem [thread:$0]  %s2, 64, %s189, [#allocation6]
        $region20: #{tpu_custom_call.1} parent=11 // pred_fallthru
          _
        // Predicated region
        $region21: #{tpu_custom_call.1} parent=11 // pred_check
          %p192 = pneg %p108
        $region22: #{tpu_custom_call.1} parent=11 // pred_check_branch
          %194 = sbr.rel (%p192) target = $region24
        $region23: #{tpu_custom_call.1} parent=11 // pred_region
          _
        $region24: #{tpu_custom_call.1} parent=11 // pred_fallthru
          _
        // Predicated region
        $region25: #{tpu_custom_call.1} parent=11 // pred_check
          %p195 = pneg %p129
        $region26: #{tpu_custom_call.1} parent=11 // pred_check_branch
          %197 = sbr.rel (%p195) target = $region28
        $region27: #{tpu_custom_call.1} parent=11 // pred_region
          %s199 = ssub.s32 128, 128
          %200 = vsyncadd [#allocation9], %s199
          %s202 = sshll.u32 [#allocation8], 4
          %s203 = int_to_ptr.vmem [resolvable:$true] %s202
          %205 = dma.hbm_to_vmem [thread:$0]  %s4, 128, %s203, [#allocation9]
        $region28: #{tpu_custom_call.1} parent=11 // pred_fallthru
          _
      $region12: #{tpu_custom_call.1} parent=5 // pred_fallthru
        _
      %p206 = scmp.lt.s32.totalorder %s19, 2
      // Predicated region
      $region29: #{tpu_custom_call.1} parent=5 // pred_check
        %p207 = pneg %p206
      $region30: #{tpu_custom_call.1} parent=5 // pred_check_branch
        %209 = sbr.rel (%p207) target = $region32
      $region31: #{tpu_custom_call.1} parent=5 // pred_region
        // Predicated region
        $region33: #{tpu_custom_call.1} parent=31 // pred_check
          %p210 = pneg %p39
        $region34: #{tpu_custom_call.1} parent=31 // pred_check_branch
          %212 = sbr.rel (%p210) target = $region36
        $region35: #{tpu_custom_call.1} parent=31 // pred_region
          %s213 = sand.u32 %s29, 1
          %s214 = scalar_lea.sflag [#allocation3], %s213
          %s215 = sand.u32 %s29, 1
          %s216 = smul.addr %s215, 8
          %s217 = scalar_lea.vmem [#allocation2], %s216
          %s219 = ssub.s32 128, 128
          %220 = vsyncadd %s214, %s219
          %s221 = smul.addr %s19, 2
          %s222 = smul.addr %s221, 64
          %s223 = scalar_lea.hbm %s0, %s222
          %s225 = sshll.u32 %s217, 4
          %s226 = int_to_ptr.vmem [resolvable:$true] %s225
          %228 = dma.hbm_to_vmem [thread:$0]  %s223, 128, %s226, %s214
        $region36: #{tpu_custom_call.1} parent=31 // pred_fallthru
          _
      $region32: #{tpu_custom_call.1} parent=5 // pred_fallthru
        _
      %p229 = scmp.le.s32.totalorder 1, %s19
      %p230 = scmp.lt.s32.totalorder %s19, 3
      %p231 = pnand %p229, %p230
      %p232 = pneg %p231
      // Predicated region
      $region37: #{tpu_custom_call.1} parent=5 // pred_check
        _
      $region38: #{tpu_custom_call.1} parent=5 // pred_check_branch
        %234 = sbr.rel (%p231) target = $region40
      $region39: #{tpu_custom_call.1} parent=5 // pred_region
        %s235 = ssub.s32 %s19, 1
        %s236 = sand.u32 %s32, 1
        %s237 = scalar_lea.sflag [#allocation3], %s236
        %s238 = sand.u32 %s32, 1
        %s239 = smul.addr %s238, 8
        %s240 = scalar_lea.vmem [#allocation2], %s239
        // Predicated region
        $region41: #{tpu_custom_call.1} parent=39 // pred_check
          %p241 = pneg %p45
        $region42: #{tpu_custom_call.1} parent=39 // pred_check_branch
          %243 = sbr.rel (%p241) target = $region44
        $region43: #{tpu_custom_call.1} parent=39 // pred_region
          %244 = dma.done %s237, 128
        $region44: #{tpu_custom_call.1} parent=39 // pred_fallthru
          _
        // Predicated region
        $region45: #{tpu_custom_call.1} parent=39 // pred_check
          %p245 = pneg %p66
        $region46: #{tpu_custom_call.1} parent=39 // pred_check_branch
          %247 = sbr.rel (%p245) target = $region48
        $region47: #{tpu_custom_call.1} parent=39 // pred_region
          %248 = dma.done [#allocation6], 64
        $region48: #{tpu_custom_call.1} parent=39 // pred_fallthru
          _
        // Predicated region
        $region49: #{tpu_custom_call.1} parent=39 // pred_check
          %p249 = pneg %p87
        $region50: #{tpu_custom_call.1} parent=39 // pred_check_branch
          %251 = sbr.rel (%p249) target = $region52
        $region51: #{tpu_custom_call.1} parent=39 // pred_region
          %252 = dma.done [#allocation6], 64
        $region52: #{tpu_custom_call.1} parent=39 // pred_fallthru
          _
        // Predicated region
        $region53: #{tpu_custom_call.1} parent=39 // pred_check
          %p253 = pneg %p129
        $region54: #{tpu_custom_call.1} parent=39 // pred_check_branch
          %255 = sbr.rel (%p253) target = $region56
        $region55: #{tpu_custom_call.1} parent=39 // pred_region
          %256 = dma.done [#allocation9], 128
        $region56: #{tpu_custom_call.1} parent=39 // pred_fallthru
          _
        %s257 = sand.u32 %s32, 1
        %s258 = scalar_lea.sflag [#allocation3], %s257
        %s259 = sand.u32 %s32, 1
        %s260 = smul.addr %s259, 8
        %s261 = scalar_lea.vmem [#allocation2], %s260
        %p262 = pneg %p45
        %p263 = pneg %p42
        %p264 = pneg %p66
        %p265 = pneg %p63
        %p266 = pneg %p87
        %p267 = pneg %p84
        %p268 = pneg %p108
        %p269 = pneg %p105
        %p270 = pneg %p129
        %p271 = pneg %p126
        %p272 = pneg %p155
        %p273 = pneg %p152
        %s274 = sand.u32 %s142, 1
        %s275 = scalar_lea.sflag [#allocation4], %s274
        %s276 = sand.u32 %s142, 1
        %s277 = smul.addr %s276, 8
        %s278 = scalar_lea.vmem [#allocation10], %s277
        %v279 = vld [vmem:[#allocation5] sm:$0xf]
        %v280 = vld [vmem:[%s3] sm:$0xf]
        %v281 = vld [vmem:[#allocation7] sm:$0xf]
        %v282 = vld [vmem:[#allocation8] sm:$0xff]
        %v283 = vld [vmem:[%s240] sm:$0xff]
        %285 = vset.pattern.permute.xlu0 0
        %286 = vperm.xlu0 %285, %v279
        %v287 = vpop.permute.xlu0 %286
        %v290 = vlaneseq
        %v291 = vshrl.u32 %v290, 7
        %v292 = vsub.s32 0, %v291
        %v293 = vrot.slane %v283, %v292
        %v294 = vlaneseq
        %v295 = vshrl.u32 %v294, 7
        %v296 = vsub.s32 4, %v295
        %v297 = vrot.slane %v283, %v296
        %v300 = vlaneseq
        %v301 = vshrl.u32 %v300, 7
        %v302 = vsub.s32 0, %v301
        %v303 = vrot.slane %v293, %v302
        %v304 = vlaneseq
        %v305 = vshrl.u32 %v304, 7
        %v306 = vsub.s32 0, %v305
        %v307 = vrot.slane %v297, %v306
        %v308 = vmul.f32 %v287, %v303
        %v309 = vmul.f32 %v287, %v307
        %310 = vset.pattern.permute.xlu0 1
        %311 = vperm.xlu0 %310, %v279
        %v312 = vpop.permute.xlu0 %311
        %v314 = vlaneseq
        %v315 = vshrl.u32 %v314, 7
        %v316 = vsub.s32 1, %v315
        %v317 = vrot.slane %v283, %v316
        %v318 = vlaneseq
        %v319 = vshrl.u32 %v318, 7
        %v320 = vsub.s32 5, %v319
        %v321 = vrot.slane %v283, %v320
        %v324 = vlaneseq
        %v325 = vshrl.u32 %v324, 7
        %v326 = vsub.s32 1, %v325
        %v327 = vrot.slane %v317, %v326
        %v328 = vlaneseq
        %v329 = vshrl.u32 %v328, 7
        %v330 = vsub.s32 1, %v329
        %v331 = vrot.slane %v321, %v330
        %v332 = vmul.f32 %v312, %v327
        %v333 = vmul.f32 %v312, %v331
        %334 = vset.pattern.permute.xlu0 2
        %335 = vperm.xlu0 %334, %v279
        %v336 = vpop.permute.xlu0 %335
        %v338 = vlaneseq
        %v339 = vshrl.u32 %v338, 7
        %v340 = vsub.s32 2, %v339
        %v341 = vrot.slane %v283, %v340
        %v342 = vlaneseq
        %v343 = vshrl.u32 %v342, 7
        %v344 = vsub.s32 6, %v343
        %v345 = vrot.slane %v283, %v344
        %v348 = vlaneseq
        %v349 = vshrl.u32 %v348, 7
        %v350 = vsub.s32 2, %v349
        %v351 = vrot.slane %v341, %v350
        %v352 = vlaneseq
        %v353 = vshrl.u32 %v352, 7
        %v354 = vsub.s32 2, %v353
        %v355 = vrot.slane %v345, %v354
        %v356 = vmul.f32 %v336, %v351
        %v357 = vmul.f32 %v336, %v355
        %v358 = vadd.f32 %v308, %v356
        %v359 = vadd.f32 %v309, %v357
        %360 = vset.pattern.permute.xlu0 3
        %361 = vperm.xlu0 %360, %v279
        %v362 = vpop.permute.xlu0 %361
        %v364 = vlaneseq
        %v365 = vshrl.u32 %v364, 7
        %v366 = vsub.s32 3, %v365
        %v367 = vrot.slane %v283, %v366
        %v368 = vlaneseq
        %v369 = vshrl.u32 %v368, 7
        %v370 = vsub.s32 7, %v369
        %v371 = vrot.slane %v283, %v370
        %v374 = vlaneseq
        %v375 = vshrl.u32 %v374, 7
        %v376 = vsub.s32 3, %v375
        %v377 = vrot.slane %v367, %v376
        %v378 = vlaneseq
        %v379 = vshrl.u32 %v378, 7
        %v380 = vsub.s32 3, %v379
        %v381 = vrot.slane %v371, %v380
        %v382 = vmul.f32 %v362, %v377
        %v383 = vmul.f32 %v362, %v381
        %v384 = vadd.f32 %v332, %v382
        %v385 = vadd.f32 %v333, %v383
        %v386 = vadd.f32 %v358, %v384
        %v387 = vadd.f32 %v359, %v385
        %vm388 = vcmp.ge.f32.partialorder %v386, 0.0
        %vm389 = vcmp.ge.f32.partialorder %v387, 0.0
        %v390 = vmul.f32 %v386, 0.1
        %v391 = vmul.f32 %v387, 0.1
        %v392 = vsel %vm388, %v386, %v390
        %v393 = vsel %vm389, %v387, %v391
        %394 = vrot.lane.b32.xlu0 %v392, 1
        %v395 = vpop.permute.xlu0 %394
        %396 = vrot.lane.b32.xlu0 %v393, 1
        %v397 = vpop.permute.xlu0 %396
        %v398 = vlaneseq
        %v399 = vand.u32 %v398, 127
        %vm400 = vcmp.lt.s32.totalorder %v399, 1
        %v401 = vsel %vm400, %v395, %v397
        %v402 = vsel %vm400, %v397, %v395
        %v404 = vlaneseq
        %v405 = vshrl.u32 %v404, 7
        %v406 = vsub.s32 0, %v405
        %v407 = vrot.slane %v282, %v406
        %v408 = vlaneseq
        %v409 = vshrl.u32 %v408, 7
        %v410 = vsub.s32 4, %v409
        %v411 = vrot.slane %v282, %v410
        %v414 = vlaneseq
        %v415 = vshrl.u32 %v414, 7
        %v416 = vsub.s32 0, %v415
        %v417 = vrot.slane %v407, %v416
        %v418 = vlaneseq
        %v419 = vshrl.u32 %v418, 7
        %v420 = vsub.s32 0, %v419
        %v421 = vrot.slane %v411, %v420
        %v422 = vmul.f32 %v402, %v417
        %v423 = vmul.f32 %v401, %v421
        %424 = vrot.lane.b32.xlu0 %v392, 127
        %v425 = vpop.permute.xlu0 %424
        %426 = vrot.lane.b32.xlu0 %v393, 127
        %v427 = vpop.permute.xlu0 %426
        %vm428 = vcmp.lt.s32.totalorder %v399, 127
        %v429 = vsel %vm428, %v425, %v427
        %v430 = vsel %vm428, %v427, %v425
        %v431 = vlaneseq
        %v432 = vshrl.u32 %v431, 7
        %v433 = vsub.s32 1, %v432
        %v434 = vrot.slane %v282, %v433
        %v435 = vlaneseq
        %v436 = vshrl.u32 %v435, 7
        %v437 = vsub.s32 5, %v436
        %v438 = vrot.slane %v282, %v437
        %v441 = vlaneseq
        %v442 = vshrl.u32 %v441, 7
        %v443 = vsub.s32 1, %v442
        %v444 = vrot.slane %v434, %v443
        %v445 = vlaneseq
        %v446 = vshrl.u32 %v445, 7
        %v447 = vsub.s32 1, %v446
        %v448 = vrot.slane %v438, %v447
        %v449 = vmul.f32 %v429, %v444
        %v450 = vmul.f32 %v430, %v448
        %452 = vset.pattern.permute.xlu0 0
        %453 = vperm.xlu0 %452, %v281
        %v454 = vpop.permute.xlu0 %453
        %v456 = vmul.f32 %v454, %v422
        %v457 = vmul.f32 %v454, %v423
        %458 = vset.pattern.permute.xlu0 1
        %459 = vperm.xlu0 %458, %v281
        %v460 = vpop.permute.xlu0 %459
        %v462 = vmul.f32 %v460, %v392
        %v463 = vmul.f32 %v460, %v393
        %v464 = vadd.f32 %v456, %v462
        %v465 = vadd.f32 %v457, %v463
        %466 = vset.pattern.permute.xlu0 2
        %467 = vperm.xlu0 %466, %v281
        %v468 = vpop.permute.xlu0 %467
        %v470 = vmul.f32 %v468, %v449
        %v471 = vmul.f32 %v468, %v450
        %v472 = vadd.f32 %v464, %v470
        %v473 = vadd.f32 %v465, %v471
        %474 = vset.pattern.permute.xlu0 3
        %475 = vperm.xlu0 %474, %v281
        %v476 = vpop.permute.xlu0 %475
        %v478 = vmul.f32 %v476, %v422
        %v479 = vmul.f32 %v476, %v423
        %480 = vset.pattern.permute.xlu0 4
        %481 = vperm.xlu0 %480, %v281
        %v482 = vpop.permute.xlu0 %481
        %v484 = vmul.f32 %v482, %v392
        %v485 = vmul.f32 %v482, %v393
        %v486 = vadd.f32 %v478, %v484
        %v487 = vadd.f32 %v479, %v485
        %488 = vset.pattern.permute.xlu0 5
        %489 = vperm.xlu0 %488, %v281
        %v490 = vpop.permute.xlu0 %489
        %v492 = vmul.f32 %v490, %v449
        %v493 = vmul.f32 %v490, %v450
        %v494 = vadd.f32 %v486, %v492
        %v495 = vadd.f32 %v487, %v493
        %496 = vset.pattern.permute.xlu0 6
        %497 = vperm.xlu0 %496, %v281
        %v498 = vpop.permute.xlu0 %497
        %v500 = vmul.f32 %v498, %v422
        %v501 = vmul.f32 %v498, %v423
        %502 = vset.pattern.permute.xlu0 7
        %503 = vperm.xlu0 %502, %v281
        %v504 = vpop.permute.xlu0 %503
        %v506 = vmul.f32 %v504, %v392
        %v507 = vmul.f32 %v504, %v393
        %v508 = vadd.f32 %v500, %v506
        %v509 = vadd.f32 %v501, %v507
        %510 = vset.pattern.permute.xlu0 8
        %511 = vperm.xlu0 %510, %v281
        %v512 = vpop.permute.xlu0 %511
        %v514 = vmul.f32 %v512, %v449
        %v515 = vmul.f32 %v512, %v450
        %v516 = vadd.f32 %v508, %v514
        %v517 = vadd.f32 %v509, %v515
        %518 = vrot.lane.b32.xlu0 %v472, 16
        %v519 = vpop.permute.xlu0 %518
        %520 = vrot.lane.b32.xlu0 %v473, 16
        %v521 = vpop.permute.xlu0 %520
        %vm522 = vcmp.lt.s32.totalorder %v399, 16
        %v523 = vsel %vm522, %v519, %v521
        %v524 = vsel %vm522, %v521, %v519
        %v525 = vlaneseq
        %v526 = vshrl.u32 %v525, 7
        %v527 = vsub.s32 2, %v526
        %v528 = vrot.slane %v282, %v527
        %v529 = vlaneseq
        %v530 = vshrl.u32 %v529, 7
        %v531 = vsub.s32 6, %v530
        %v532 = vrot.slane %v282, %v531
        %v535 = vlaneseq
        %v536 = vshrl.u32 %v535, 7
        %v537 = vsub.s32 2, %v536
        %v538 = vrot.slane %v528, %v537
        %v539 = vlaneseq
        %v540 = vshrl.u32 %v539, 7
        %v541 = vsub.s32 2, %v540
        %v542 = vrot.slane %v532, %v541
        %v543 = vmul.f32 %v524, %v538
        %v544 = vmul.f32 %v523, %v542
        %545 = vrot.lane.b32.xlu0 %v516, 112
        %v546 = vpop.permute.xlu0 %545
        %547 = vrot.lane.b32.xlu0 %v517, 112
        %v548 = vpop.permute.xlu0 %547
        %vm549 = vcmp.lt.s32.totalorder %v399, 112
        %v550 = vsel %vm549, %v546, %v548
        %v551 = vsel %vm549, %v548, %v546
        %v552 = vlaneseq
        %v553 = vshrl.u32 %v552, 7
        %v554 = vsub.s32 3, %v553
        %v555 = vrot.slane %v282, %v554
        %v556 = vlaneseq
        %v557 = vshrl.u32 %v556, 7
        %v558 = vsub.s32 7, %v557
        %v559 = vrot.slane %v282, %v558
        %v562 = vlaneseq
        %v563 = vshrl.u32 %v562, 7
        %v564 = vsub.s32 3, %v563
        %v565 = vrot.slane %v555, %v564
        %v566 = vlaneseq
        %v567 = vshrl.u32 %v566, 7
        %v568 = vsub.s32 3, %v567
        %v569 = vrot.slane %v559, %v568
        %v570 = vmul.f32 %v550, %v565
        %v571 = vmul.f32 %v551, %v569
        %v572 = vadd.f32 %v494, %v543
        %v573 = vadd.f32 %v495, %v544
        %v574 = vadd.f32 %v572, %v570
        %v575 = vadd.f32 %v573, %v571
        %vm576 = vcmp.ge.f32.partialorder %v574, 0.0
        %vm577 = vcmp.ge.f32.partialorder %v575, 0.0
        %v578 = vmul.f32 %v574, 0.1
        %v579 = vmul.f32 %v575, 0.1
        %v580 = vsel %vm576, %v574, %v578
        %v581 = vsel %vm577, %v575, %v579
        %583 = vset.pattern.permute.xlu0 0
        %584 = vperm.xlu0 %583, %v280
        %v585 = vpop.permute.xlu0 %584
        %v587 = vlaneseq
        %v588 = vshrl.u32 %v587, 7
        %v589 = vsub.s32 0, %v588
        %v590 = vrot.slane %v580, %v589
        %v591 = vlaneseq
        %v592 = vshrl.u32 %v591, 7
        %v593 = vsub.s32 0, %v592
        %v594 = vrot.slane %v581, %v593
        %v595 = vmul.f32 %v585, %v590
        %v596 = vmul.f32 %v585, %v594
        %597 = vset.pattern.permute.xlu0 1
        %598 = vperm.xlu0 %597, %v280
        %v599 = vpop.permute.xlu0 %598
        %v601 = vlaneseq
        %v602 = vshrl.u32 %v601, 7
        %v603 = vsub.s32 1, %v602
        %v604 = vrot.slane %v580, %v603
        %v605 = vlaneseq
        %v606 = vshrl.u32 %v605, 7
        %v607 = vsub.s32 1, %v606
        %v608 = vrot.slane %v581, %v607
        %v609 = vmul.f32 %v599, %v604
        %v610 = vmul.f32 %v599, %v608
        %611 = vset.pattern.permute.xlu0 2
        %612 = vperm.xlu0 %611, %v280
        %v613 = vpop.permute.xlu0 %612
        %v615 = vlaneseq
        %v616 = vshrl.u32 %v615, 7
        %v617 = vsub.s32 2, %v616
        %v618 = vrot.slane %v580, %v617
        %v619 = vlaneseq
        %v620 = vshrl.u32 %v619, 7
        %v621 = vsub.s32 2, %v620
        %v622 = vrot.slane %v581, %v621
        %v623 = vmul.f32 %v613, %v618
        %v624 = vmul.f32 %v613, %v622
        %v625 = vadd.f32 %v595, %v623
        %v626 = vadd.f32 %v596, %v624
        %627 = vset.pattern.permute.xlu0 3
        %628 = vperm.xlu0 %627, %v280
        %v629 = vpop.permute.xlu0 %628
        %v631 = vlaneseq
        %v632 = vshrl.u32 %v631, 7
        %v633 = vsub.s32 3, %v632
        %v634 = vrot.slane %v580, %v633
        %v635 = vlaneseq
        %v636 = vshrl.u32 %v635, 7
        %v637 = vsub.s32 3, %v636
        %v638 = vrot.slane %v581, %v637
        %v639 = vmul.f32 %v629, %v634
        %v640 = vmul.f32 %v629, %v638
        %v641 = vadd.f32 %v609, %v639
        %v642 = vadd.f32 %v610, %v640
        %v643 = vadd.f32 %v625, %v641
        %v644 = vadd.f32 %v626, %v642
        %v647 = vcombine.low %v643, %v644
        %649 = vst [vmem:[%s278] sm:$0xff] %v647
        %s650 = sand.u32 %s142, 1
        %s651 = scalar_lea.sflag [#allocation4], %s650
        %s652 = sand.u32 %s142, 1
        %s653 = smul.addr %s652, 8
        %s654 = scalar_lea.vmem [#allocation10], %s653
        // Predicated region
        $region57: #{tpu_custom_call.1} parent=39 // pred_check
          %p655 = pneg %p152
        $region58: #{tpu_custom_call.1} parent=39 // pred_check_branch
          %657 = sbr.rel (%p655) target = $region60
        $region59: #{tpu_custom_call.1} parent=39 // pred_region
          %s659 = ssub.s32 128, 128
          %660 = vsyncadd %s651, %s659
          %s661 = smul.addr %s24, 2
          %s662 = smul.addr %s661, 64
          %s663 = scalar_lea.hbm %s5, %s662
          %s665 = sshll.u32 %s654, 4
          %s666 = int_to_ptr.vmem [resolvable:$true] %s665
          %668 = dma.vmem_to_hbm [thread:$0]  %s666, 128, %s663, %s651
        $region60: #{tpu_custom_call.1} parent=39 // pred_fallthru
          _
      $region40: #{tpu_custom_call.1} parent=5 // pred_fallthru
        _
      %p669 = scmp.le.s32.totalorder 2, %s19
      // Predicated region
      $region61: #{tpu_custom_call.1} parent=5 // pred_check
        %p670 = pneg %p669
      $region62: #{tpu_custom_call.1} parent=5 // pred_check_branch
        %672 = sbr.rel (%p670) target = $region64
      $region63: #{tpu_custom_call.1} parent=5 // pred_region
        %s673 = ssub.s32 %s19, 2
        // Predicated region
        $region65: #{tpu_custom_call.1} parent=63 // pred_check
          %p674 = pneg %p158
        $region66: #{tpu_custom_call.1} parent=63 // pred_check_branch
          %676 = sbr.rel (%p674) target = $region68
        $region67: #{tpu_custom_call.1} parent=63 // pred_region
          %s677 = sand.u32 %s143, 1
          %s678 = scalar_lea.sflag [#allocation4], %s677
          %s679 = sand.u32 %s143, 1
          %s680 = smul.addr %s679, 8
          %s681 = scalar_lea.vmem [#allocation10], %s680
          %682 = dma.done %s678, 128
        $region68: #{tpu_custom_call.1} parent=63 // pred_fallthru
          _
      $region64: #{tpu_custom_call.1} parent=5 // pred_fallthru
        _
    $region6: #{tpu_custom_call.1} parent=1 // loop_footer
      %s23 = sadd.s32 1, %s19
    $region7: #{tpu_custom_call.1} parent=1 // loop_footer_branch
      %18 = sbr.rel target = $region3
    $region8: #{tpu_custom_call.1} parent=1 // loop_exit
      _
    %683 = vsyncpa [#allocation3], 1
    %s684 = scalar_lea.sflag [#allocation3], 1
    %685 = vsyncpa %s684, 1
    %686 = vsyncpa [#allocation6], 1
    %687 = vsyncpa [#allocation9], 1
    %688 = vsyncpa [#allocation4], 1
    %s689 = scalar_lea.sflag [#allocation4], 1
    %690 = vsyncpa %s689, 1

// kernel: tpu_custom_call.1
$region0: #{tpu_custom_call.1}
  #allocation0 [shape = 'u32[]', space=smem, size = 0x4, offset = 0x4, fixed_abs, tag = 'smem constant byte address 0x4 - core index']
  #allocation1 [shape = 'u32[144,128]{1,0:T(1,128)}', space=vmem, size = 0x12000, scoped, tag = 'internal scratch']
  %s0 = inlined_call_operand.hbm [shape: f32[2,4,256], index: 0, kind: input, shape index: {}]
  %s1 = inlined_call_operand.hbm [shape: f32[4,4], index: 1, kind: input, shape index: {}]
  %s2 = inlined_call_operand.hbm [shape: f32[4,9], index: 2, kind: input, shape index: {}]
  %s3 = inlined_call_operand.vmem [shape: f32[4,4], index: 3, kind: input, shape index: {}]
  %s4 = inlined_call_operand.hbm [shape: f32[4,256], index: 4, kind: input, shape index: {}]
  %s5 = inlined_call_operand.hbm [shape: f32[2,4,256], index: 5, kind: output, shape index: {}]
  %s6 = sld [smem:[#allocation0]]
  $region69: #{tpu_custom_call.1} parent=0
    _
  %s8 = ssub.s32 1, %s6
  %s9 = scalar_select 0, %s8, %s6
  $region1: #{tpu_custom_call.1} parent=0
    #allocation2 [shape = 'u8[8192]{0}', space=vmem, size = 0x2000, scoped, tag = 'input window, operand 0']
    #allocation3 [shape = 's32[2]{0}', space=sflag, size = 0x8, scoped, tag = 'scoped memory for tpu_custom_call.1']
    #allocation4 [shape = 's32[2]{0}', space=sflag, size = 0x8, scoped, tag = 'scoped memory for tpu_custom_call.1']
    #allocation5 [shape = 'u8[2048]{0}', space=vmem, size = 0x800, scoped, tag = 'input window, operand 1, single buffered']
    #allocation6 [shape = 's32[1]{0}', space=sflag, size = 0x4, scoped, tag = 'scoped memory for tpu_custom_call.1']
    #allocation7 [shape = 'u8[2048]{0}', space=vmem, size = 0x800, scoped, tag = 'input window, operand 2, single buffered']
    #allocation8 [shape = 'u8[4096]{0}', space=vmem, size = 0x1000, scoped, tag = 'input window, operand 4, single buffered']
    #allocation9 [shape = 's32[1]{0}', space=sflag, size = 0x4, scoped, tag = 'scoped memory for tpu_custom_call.1']
    #allocation10 [shape = 'u8[8192]{0}', space=vmem, size = 0x2000, scoped, tag = 'output window, operand 0']
    %10 = vsyncpa [#allocation3], 0
    %s11 = scalar_lea.sflag [#allocation3], 1
    %12 = vsyncpa %s11, 0
    %13 = vsyncpa [#allocation6], 0
    %14 = vsyncpa [#allocation9], 0
    %15 = vsyncpa [#allocation4], 0
    %s16 = scalar_lea.sflag [#allocation4], 1
    %17 = vsyncpa %s16, 0
    loop: start=0, step=1, limit=4
    $region2: #{tpu_custom_call.1} parent=1 // loop_pre_header
      _
    $region3: #{tpu_custom_call.1} parent=1 // loop_header
      %s19 = sphi 0, %s23
      %p20 = scmp.ge.s32.totalorder %s19, 4
      %s29 = sphi 0, %s31
      %s32 = sphi 0, %s29
      %s33 = sphi 0, %s32
      %s49 = sphi 0, %s33
      %s53 = sphi 0, %s53
      %s55 = sphi 0, %s53
      %s56 = sphi 0, %s55
      %s70 = sphi 0, %s56
      %s74 = sphi 0, %s74
      %s76 = sphi 0, %s74
      %s77 = sphi 0, %s76
      %s91 = sphi 0, %s77
      %s95 = sphi 0, %s95
      %s97 = sphi 0, %s95
      %s98 = sphi 0, %s97
      %s112 = sphi 0, %s98
      %s116 = sphi 0, %s116
      %s118 = sphi 0, %s116
      %s119 = sphi 0, %s118
      %s133 = sphi 0, %s119
      %s139 = sphi 0, %s141
      %s142 = sphi 0, %s139
      %s143 = sphi 0, %s142
      %s159 = sphi 0, %s143
    $region4: #{tpu_custom_call.1} parent=1 // loop_header_branch
      %22 = sbr.rel (%p20) target = $region8
    $region5: #{tpu_custom_call.1} parent=1 // loop_body
      %s24 = ssub.s32 %s19, 1
      %s25 = ssub.s32 %s19, 2
      %s26 = sadd.s32 %s19, 1
      %s27 = ssub.s32 %s19, %s26
      %p28 = scmp.eq.s32.totalorder %s27, 0
      %s30 = sadd.s32 %s29, 1
      %s31 = scalar_select %p28, %s29, %s30
      %p34 = pneg %p28
      %p35 = scmp.eq.s32.totalorder %s19, 1
      %p36 = por %p34, %p35
      %p37 = scmp.ne.s32.totalorder %s29, %s32
      %p38 = scmp.eq.s32.totalorder %s19, 0
      %p39 = por %p37, %p38
      %p40 = scmp.ne.s32.totalorder %s29, %s32
      %p41 = scmp.eq.s32.totalorder %s24, 1
      %p42 = por %p40, %p41
      %p43 = scmp.ne.s32.totalorder %s32, %s33
      %p44 = scmp.eq.s32.totalorder %s24, 0
      %p45 = por %p43, %p44
      %p46 = scmp.ne.s32.totalorder %s32, %s33
      %p47 = scmp.eq.s32.totalorder %s25, 1
      %p48 = por %p46, %p47
      %p50 = scmp.ne.s32.totalorder %s33, %s49
      %p51 = scmp.eq.s32.totalorder %s25, 0
      %p52 = por %p50, %p51
      %s54 = sadd.s32 %s53, 1
      %p57 = scmp.eq.s32.totalorder %s19, 1
      %p58 = scmp.ne.s32.totalorder %s53, %s55
      %p59 = scmp.eq.s32.totalorder %s19, 0
      %p60 = por %p58, %p59
      %p61 = scmp.ne.s32.totalorder %s53, %s55
      %p62 = scmp.eq.s32.totalorder %s24, 1
      %p63 = por %p61, %p62
      %p64 = scmp.ne.s32.totalorder %s55, %s56
      %p65 = scmp.eq.s32.totalorder %s24, 0
      %p66 = por %p64, %p65
      %p67 = scmp.ne.s32.totalorder %s55, %s56
      %p68 = scmp.eq.s32.totalorder %s25, 1
      %p69 = por %p67, %p68
      %p71 = scmp.ne.s32.totalorder %s56, %s70
      %p72 = scmp.eq.s32.totalorder %s25, 0
      %p73 = por %p71, %p72
      %s75 = sadd.s32 %s74, 1
      %p78 = scmp.eq.s32.totalorder %s19, 1
      %p79 = scmp.ne.s32.totalorder %s74, %s76
      %p80 = scmp.eq.s32.totalorder %s19, 0
      %p81 = por %p79, %p80
      %p82 = scmp.ne.s32.totalorder %s74, %s76
      %p83 = scmp.eq.s32.totalorder %s24, 1
      %p84 = por %p82, %p83
      %p85 = scmp.ne.s32.totalorder %s76, %s77
      %p86 = scmp.eq.s32.totalorder %s24, 0
      %p87 = por %p85, %p86
      %p88 = scmp.ne.s32.totalorder %s76, %s77
      %p89 = scmp.eq.s32.totalorder %s25, 1
      %p90 = por %p88, %p89
      %p92 = scmp.ne.s32.totalorder %s77, %s91
      %p93 = scmp.eq.s32.totalorder %s25, 0
      %p94 = por %p92, %p93
      %s96 = sadd.s32 %s95, 1
      %p99 = scmp.eq.s32.totalorder %s19, 1
      %p100 = scmp.ne.s32.totalorder %s95, %s97
      %p101 = scmp.eq.s32.totalorder %s19, 0
      %p102 = por %p100, %p101
      %p103 = scmp.ne.s32.totalorder %s95, %s97
      %p104 = scmp.eq.s32.totalorder %s24, 1
      %p105 = por %p103, %p104
      %p106 = scmp.ne.s32.totalorder %s97, %s98
      %p107 = scmp.eq.s32.totalorder %s24, 0
      %p108 = por %p106, %p107
      %p109 = scmp.ne.s32.totalorder %s97, %s98
      %p110 = scmp.eq.s32.totalorder %s25, 1
      %p111 = por %p109, %p110
      %p113 = scmp.ne.s32.totalorder %s98, %s112
      %p114 = scmp.eq.s32.totalorder %s25, 0
      %p115 = por %p113, %p114
      %s117 = sadd.s32 %s116, 1
      %p120 = scmp.eq.s32.totalorder %s19, 1
      %p121 = scmp.ne.s32.totalorder %s116, %s118
      %p122 = scmp.eq.s32.totalorder %s19, 0
      %p123 = por %p121, %p122
      %p124 = scmp.ne.s32.totalorder %s116, %s118
      %p125 = scmp.eq.s32.totalorder %s24, 1
      %p126 = por %p124, %p125
      %p127 = scmp.ne.s32.totalorder %s118, %s119
      %p128 = scmp.eq.s32.totalorder %s24, 0
      %p129 = por %p127, %p128
      %p130 = scmp.ne.s32.totalorder %s118, %s119
      %p131 = scmp.eq.s32.totalorder %s25, 1
      %p132 = por %p130, %p131
      %p134 = scmp.ne.s32.totalorder %s119, %s133
      %p135 = scmp.eq.s32.totalorder %s25, 0
      %p136 = por %p134, %p135
      %s137 = ssub.s32 %s19, %s26
      %p138 = scmp.eq.s32.totalorder %s137, 0
      %s140 = sadd.s32 %s139, 1
      %s141 = scalar_select %p138, %s139, %s140
      %p144 = pneg %p138
      %p145 = scmp.eq.s32.totalorder %s19, 1
      %p146 = por %p144, %p145
      %p147 = scmp.ne.s32.totalorder %s139, %s142
      %p148 = scmp.eq.s32.totalorder %s19, 0
      %p149 = por %p147, %p148
      %p150 = scmp.ne.s32.totalorder %s139, %s142
      %p151 = scmp.eq.s32.totalorder %s24, 1
      %p152 = por %p150, %p151
      %p153 = scmp.ne.s32.totalorder %s142, %s143
      %p154 = scmp.eq.s32.totalorder %s24, 0
      %p155 = por %p153, %p154
      %p156 = scmp.ne.s32.totalorder %s142, %s143
      %p157 = scmp.eq.s32.totalorder %s25, 1
      %p158 = por %p156, %p157
      %p160 = scmp.ne.s32.totalorder %s143, %s159
      %p161 = scmp.eq.s32.totalorder %s25, 0
      %p162 = por %p160, %p161
      %p163 = scmp.le.s32.totalorder 1, %s19
      %p164 = scmp.lt.s32.totalorder %s19, 3
      %p165 = pnand %p163, %p164
      %p166 = pneg %p165
      // Predicated region
      $region9: #{tpu_custom_call.1} parent=5 // pred_check
        _
      $region10: #{tpu_custom_call.1} parent=5 // pred_check_branch
        %168 = sbr.rel (%p165) target = $region12
      $region11: #{tpu_custom_call.1} parent=5 // pred_region
        %s169 = ssub.s32 %s19, 1
        // Predicated region
        $region13: #{tpu_custom_call.1} parent=11 // pred_check
          %p170 = pneg %p66
        $region14: #{tpu_custom_call.1} parent=11 // pred_check_branch
          %172 = sbr.rel (%p170) target = $region16
        $region15: #{tpu_custom_call.1} parent=11 // pred_region
          %s174 = ssub.s32 64, 64
          %175 = vsyncadd [#allocation6], %s174
          %s177 = sshll.u32 [#allocation5], 4
          %s178 = int_to_ptr.vmem [resolvable:$true] %s177
          %180 = dma.hbm_to_vmem [thread:$0]  %s1, 64, %s178, [#allocation6]
        $region16: #{tpu_custom_call.1} parent=11 // pred_fallthru
          _
        // Predicated region
        $region17: #{tpu_custom_call.1} parent=11 // pred_check
          %p181 = pneg %p87
        $region18: #{tpu_custom_call.1} parent=11 // pred_check_branch
          %183 = sbr.rel (%p181) target = $region20
        $region19: #{tpu_custom_call.1} parent=11 // pred_region
          %s185 = ssub.s32 64, 64
          %186 = vsyncadd [#allocation6], %s185
          %s188 = sshll.u32 [#allocation7], 4
          %s189 = int_to_ptr.vmem [resolvable:$true] %s188
          %191 = dma.hbm_to_vmem [thread:$0]  %s2, 64, %s189, [#allocation6]
        $region20: #{tpu_custom_call.1} parent=11 // pred_fallthru
          _
        // Predicated region
        $region21: #{tpu_custom_call.1} parent=11 // pred_check
          %p192 = pneg %p108
        $region22: #{tpu_custom_call.1} parent=11 // pred_check_branch
          %194 = sbr.rel (%p192) target = $region24
        $region23: #{tpu_custom_call.1} parent=11 // pred_region
          _
        $region24: #{tpu_custom_call.1} parent=11 // pred_fallthru
          _
        // Predicated region
        $region25: #{tpu_custom_call.1} parent=11 // pred_check
          %p195 = pneg %p129
        $region26: #{tpu_custom_call.1} parent=11 // pred_check_branch
          %197 = sbr.rel (%p195) target = $region28
        $region27: #{tpu_custom_call.1} parent=11 // pred_region
          %s199 = ssub.s32 128, 128
          %200 = vsyncadd [#allocation9], %s199
          %s202 = sshll.u32 [#allocation8], 4
          %s203 = int_to_ptr.vmem [resolvable:$true] %s202
          %205 = dma.hbm_to_vmem [thread:$0]  %s4, 128, %s203, [#allocation9]
        $region28: #{tpu_custom_call.1} parent=11 // pred_fallthru
          _
      $region12: #{tpu_custom_call.1} parent=5 // pred_fallthru
        _
      %p206 = scmp.lt.s32.totalorder %s19, 2
      // Predicated region
      $region29: #{tpu_custom_call.1} parent=5 // pred_check
        %p207 = pneg %p206
      $region30: #{tpu_custom_call.1} parent=5 // pred_check_branch
        %209 = sbr.rel (%p207) target = $region32
      $region31: #{tpu_custom_call.1} parent=5 // pred_region
        // Predicated region
        $region33: #{tpu_custom_call.1} parent=31 // pred_check
          %p210 = pneg %p39
        $region34: #{tpu_custom_call.1} parent=31 // pred_check_branch
          %212 = sbr.rel (%p210) target = $region36
        $region35: #{tpu_custom_call.1} parent=31 // pred_region
          %s213 = sand.u32 %s29, 1
          %s214 = scalar_lea.sflag [#allocation3], %s213
          %s215 = sand.u32 %s29, 1
          %s216 = smul.addr %s215, 8
          %s217 = scalar_lea.vmem [#allocation2], %s216
          %s219 = ssub.s32 128, 128
          %220 = vsyncadd %s214, %s219
          %s221 = smul.addr %s19, 2
          %s222 = smul.addr %s221, 64
          %s223 = scalar_lea.hbm %s0, %s222
          %s225 = sshll.u32 %s217, 4
          %s226 = int_to_ptr.vmem [resolvable:$true] %s225
          %228 = dma.hbm_to_vmem [thread:$0]  %s223, 128, %s226, %s214
        $region36: #{tpu_custom_call.1} parent=31 // pred_fallthru
          _
      $region32: #{tpu_custom_call.1} parent=5 // pred_fallthru
        _
      %p229 = scmp.le.s32.totalorder 1, %s19
      %p230 = scmp.lt.s32.totalorder %s19, 3
      %p231 = pnand %p229, %p230
      %p232 = pneg %p231
      // Predicated region
      $region37: #{tpu_custom_call.1} parent=5 // pred_check
        _
      $region38: #{tpu_custom_call.1} parent=5 // pred_check_branch
        %234 = sbr.rel (%p231) target = $region40
      $region39: #{tpu_custom_call.1} parent=5 // pred_region
        %s235 = ssub.s32 %s19, 1
        %s236 = sand.u32 %s32, 1
        %s237 = scalar_lea.sflag [#allocation3], %s236
        %s238 = sand.u32 %s32, 1
        %s239 = smul.addr %s238, 8
        %s240 = scalar_lea.vmem [#allocation2], %s239
        // Predicated region
        $region41: #{tpu_custom_call.1} parent=39 // pred_check
          %p241 = pneg %p45
        $region42: #{tpu_custom_call.1} parent=39 // pred_check_branch
          %243 = sbr.rel (%p241) target = $region44
        $region43: #{tpu_custom_call.1} parent=39 // pred_region
          %244 = dma.done %s237, 128
        $region44: #{tpu_custom_call.1} parent=39 // pred_fallthru
          _
        // Predicated region
        $region45: #{tpu_custom_call.1} parent=39 // pred_check
          %p245 = pneg %p66
        $region46: #{tpu_custom_call.1} parent=39 // pred_check_branch
          %247 = sbr.rel (%p245) target = $region48
        $region47: #{tpu_custom_call.1} parent=39 // pred_region
          %248 = dma.done [#allocation6], 64
        $region48: #{tpu_custom_call.1} parent=39 // pred_fallthru
          _
        // Predicated region
        $region49: #{tpu_custom_call.1} parent=39 // pred_check
          %p249 = pneg %p87
        $region50: #{tpu_custom_call.1} parent=39 // pred_check_branch
          %251 = sbr.rel (%p249) target = $region52
        $region51: #{tpu_custom_call.1} parent=39 // pred_region
          %252 = dma.done [#allocation6], 64
        $region52: #{tpu_custom_call.1} parent=39 // pred_fallthru
          _
        // Predicated region
        $region53: #{tpu_custom_call.1} parent=39 // pred_check
          %p253 = pneg %p129
        $region54: #{tpu_custom_call.1} parent=39 // pred_check_branch
          %255 = sbr.rel (%p253) target = $region56
        $region55: #{tpu_custom_call.1} parent=39 // pred_region
          %256 = dma.done [#allocation9], 128
        $region56: #{tpu_custom_call.1} parent=39 // pred_fallthru
          _
        %s257 = sand.u32 %s32, 1
        %s258 = scalar_lea.sflag [#allocation3], %s257
        %s259 = sand.u32 %s32, 1
        %s260 = smul.addr %s259, 8
        %s261 = scalar_lea.vmem [#allocation2], %s260
        %p262 = pneg %p45
        %p263 = pneg %p42
        %p264 = pneg %p66
        %p265 = pneg %p63
        %p266 = pneg %p87
        %p267 = pneg %p84
        %p268 = pneg %p108
        %p269 = pneg %p105
        %p270 = pneg %p129
        %p271 = pneg %p126
        %p272 = pneg %p155
        %p273 = pneg %p152
        %s274 = sand.u32 %s142, 1
        %s275 = scalar_lea.sflag [#allocation4], %s274
        %s276 = sand.u32 %s142, 1
        %s277 = smul.addr %s276, 8
        %s278 = scalar_lea.vmem [#allocation10], %s277
        %v279 = vld [vmem:[#allocation5] sm:$0xf]
        %v280 = vld [vmem:[%s3] sm:$0xf]
        %v281 = vld [vmem:[#allocation7] sm:$0xf]
        %v282 = vld [vmem:[#allocation8] sm:$0xff]
        %v283 = vld [vmem:[%s240] sm:$0xff]
        %285 = vset.pattern.permute.xlu0 0
        %286 = vperm.xlu0 %285, %v279
        %v287 = vpop.permute.xlu0 %286
        %v290 = vlaneseq
        %v291 = vshrl.u32 %v290, 7
        %v292 = vsub.s32 0, %v291
        %v293 = vrot.slane %v283, %v292
        %v294 = vlaneseq
        %v295 = vshrl.u32 %v294, 7
        %v296 = vsub.s32 4, %v295
        %v297 = vrot.slane %v283, %v296
        %v300 = vlaneseq
        %v301 = vshrl.u32 %v300, 7
        %v302 = vsub.s32 0, %v301
        %v303 = vrot.slane %v293, %v302
        %v304 = vlaneseq
        %v305 = vshrl.u32 %v304, 7
        %v306 = vsub.s32 0, %v305
        %v307 = vrot.slane %v297, %v306
        %v308 = vmul.f32 %v287, %v303
        %v309 = vmul.f32 %v287, %v307
        %310 = vset.pattern.permute.xlu0 1
        %311 = vperm.xlu0 %310, %v279
        %v312 = vpop.permute.xlu0 %311
        %v314 = vlaneseq
        %v315 = vshrl.u32 %v314, 7
        %v316 = vsub.s32 1, %v315
        %v317 = vrot.slane %v283, %v316
        %v318 = vlaneseq
        %v319 = vshrl.u32 %v318, 7
        %v320 = vsub.s32 5, %v319
        %v321 = vrot.slane %v283, %v320
        %v324 = vlaneseq
        %v325 = vshrl.u32 %v324, 7
        %v326 = vsub.s32 1, %v325
        %v327 = vrot.slane %v317, %v326
        %v328 = vlaneseq
        %v329 = vshrl.u32 %v328, 7
        %v330 = vsub.s32 1, %v329
        %v331 = vrot.slane %v321, %v330
        %v332 = vmul.f32 %v312, %v327
        %v333 = vmul.f32 %v312, %v331
        %334 = vset.pattern.permute.xlu0 2
        %335 = vperm.xlu0 %334, %v279
        %v336 = vpop.permute.xlu0 %335
        %v338 = vlaneseq
        %v339 = vshrl.u32 %v338, 7
        %v340 = vsub.s32 2, %v339
        %v341 = vrot.slane %v283, %v340
        %v342 = vlaneseq
        %v343 = vshrl.u32 %v342, 7
        %v344 = vsub.s32 6, %v343
        %v345 = vrot.slane %v283, %v344
        %v348 = vlaneseq
        %v349 = vshrl.u32 %v348, 7
        %v350 = vsub.s32 2, %v349
        %v351 = vrot.slane %v341, %v350
        %v352 = vlaneseq
        %v353 = vshrl.u32 %v352, 7
        %v354 = vsub.s32 2, %v353
        %v355 = vrot.slane %v345, %v354
        %v356 = vmul.f32 %v336, %v351
        %v357 = vmul.f32 %v336, %v355
        %v358 = vadd.f32 %v308, %v356
        %v359 = vadd.f32 %v309, %v357
        %360 = vset.pattern.permute.xlu0 3
        %361 = vperm.xlu0 %360, %v279
        %v362 = vpop.permute.xlu0 %361
        %v364 = vlaneseq
        %v365 = vshrl.u32 %v364, 7
        %v366 = vsub.s32 3, %v365
        %v367 = vrot.slane %v283, %v366
        %v368 = vlaneseq
        %v369 = vshrl.u32 %v368, 7
        %v370 = vsub.s32 7, %v369
        %v371 = vrot.slane %v283, %v370
        %v374 = vlaneseq
        %v375 = vshrl.u32 %v374, 7
        %v376 = vsub.s32 3, %v375
        %v377 = vrot.slane %v367, %v376
        %v378 = vlaneseq
        %v379 = vshrl.u32 %v378, 7
        %v380 = vsub.s32 3, %v379
        %v381 = vrot.slane %v371, %v380
        %v382 = vmul.f32 %v362, %v377
        %v383 = vmul.f32 %v362, %v381
        %v384 = vadd.f32 %v332, %v382
        %v385 = vadd.f32 %v333, %v383
        %v386 = vadd.f32 %v358, %v384
        %v387 = vadd.f32 %v359, %v385
        %vm388 = vcmp.ge.f32.partialorder %v386, 0.0
        %vm389 = vcmp.ge.f32.partialorder %v387, 0.0
        %v390 = vmul.f32 %v386, 0.1
        %v391 = vmul.f32 %v387, 0.1
        %v392 = vsel %vm388, %v386, %v390
        %v393 = vsel %vm389, %v387, %v391
        %394 = vrot.lane.b32.xlu0 %v392, 1
        %v395 = vpop.permute.xlu0 %394
        %396 = vrot.lane.b32.xlu0 %v393, 1
        %v397 = vpop.permute.xlu0 %396
        %v398 = vlaneseq
        %v399 = vand.u32 %v398, 127
        %vm400 = vcmp.lt.s32.totalorder %v399, 1
        %v401 = vsel %vm400, %v395, %v397
        %v402 = vsel %vm400, %v397, %v395
        %v404 = vlaneseq
        %v405 = vshrl.u32 %v404, 7
        %v406 = vsub.s32 0, %v405
        %v407 = vrot.slane %v282, %v406
        %v408 = vlaneseq
        %v409 = vshrl.u32 %v408, 7
        %v410 = vsub.s32 4, %v409
        %v411 = vrot.slane %v282, %v410
        %v414 = vlaneseq
        %v415 = vshrl.u32 %v414, 7
        %v416 = vsub.s32 0, %v415
        %v417 = vrot.slane %v407, %v416
        %v418 = vlaneseq
        %v419 = vshrl.u32 %v418, 7
        %v420 = vsub.s32 0, %v419
        %v421 = vrot.slane %v411, %v420
        %v422 = vmul.f32 %v402, %v417
        %v423 = vmul.f32 %v401, %v421
        %424 = vrot.lane.b32.xlu0 %v392, 127
        %v425 = vpop.permute.xlu0 %424
        %426 = vrot.lane.b32.xlu0 %v393, 127
        %v427 = vpop.permute.xlu0 %426
        %vm428 = vcmp.lt.s32.totalorder %v399, 127
        %v429 = vsel %vm428, %v425, %v427
        %v430 = vsel %vm428, %v427, %v425
        %v431 = vlaneseq
        %v432 = vshrl.u32 %v431, 7
        %v433 = vsub.s32 1, %v432
        %v434 = vrot.slane %v282, %v433
        %v435 = vlaneseq
        %v436 = vshrl.u32 %v435, 7
        %v437 = vsub.s32 5, %v436
        %v438 = vrot.slane %v282, %v437
        %v441 = vlaneseq
        %v442 = vshrl.u32 %v441, 7
        %v443 = vsub.s32 1, %v442
        %v444 = vrot.slane %v434, %v443
        %v445 = vlaneseq
        %v446 = vshrl.u32 %v445, 7
        %v447 = vsub.s32 1, %v446
        %v448 = vrot.slane %v438, %v447
        %v449 = vmul.f32 %v429, %v444
        %v450 = vmul.f32 %v430, %v448
        %452 = vset.pattern.permute.xlu0 0
        %453 = vperm.xlu0 %452, %v281
        %v454 = vpop.permute.xlu0 %453
        %v456 = vmul.f32 %v454, %v422
        %v457 = vmul.f32 %v454, %v423
        %458 = vset.pattern.permute.xlu0 1
        %459 = vperm.xlu0 %458, %v281
        %v460 = vpop.permute.xlu0 %459
        %v462 = vmul.f32 %v460, %v392
        %v463 = vmul.f32 %v460, %v393
        %v464 = vadd.f32 %v456, %v462
        %v465 = vadd.f32 %v457, %v463
        %466 = vset.pattern.permute.xlu0 2
        %467 = vperm.xlu0 %466, %v281
        %v468 = vpop.permute.xlu0 %467
        %v470 = vmul.f32 %v468, %v449
        %v471 = vmul.f32 %v468, %v450
        %v472 = vadd.f32 %v464, %v470
        %v473 = vadd.f32 %v465, %v471
        %474 = vset.pattern.permute.xlu0 3
        %475 = vperm.xlu0 %474, %v281
        %v476 = vpop.permute.xlu0 %475
        %v478 = vmul.f32 %v476, %v422
        %v479 = vmul.f32 %v476, %v423
        %480 = vset.pattern.permute.xlu0 4
        %481 = vperm.xlu0 %480, %v281
        %v482 = vpop.permute.xlu0 %481
        %v484 = vmul.f32 %v482, %v392
        %v485 = vmul.f32 %v482, %v393
        %v486 = vadd.f32 %v478, %v484
        %v487 = vadd.f32 %v479, %v485
        %488 = vset.pattern.permute.xlu0 5
        %489 = vperm.xlu0 %488, %v281
        %v490 = vpop.permute.xlu0 %489
        %v492 = vmul.f32 %v490, %v449
        %v493 = vmul.f32 %v490, %v450
        %v494 = vadd.f32 %v486, %v492
        %v495 = vadd.f32 %v487, %v493
        %496 = vset.pattern.permute.xlu0 6
        %497 = vperm.xlu0 %496, %v281
        %v498 = vpop.permute.xlu0 %497
        %v500 = vmul.f32 %v498, %v422
        %v501 = vmul.f32 %v498, %v423
        %502 = vset.pattern.permute.xlu0 7
        %503 = vperm.xlu0 %502, %v281
        %v504 = vpop.permute.xlu0 %503
        %v506 = vmul.f32 %v504, %v392
        %v507 = vmul.f32 %v504, %v393
        %v508 = vadd.f32 %v500, %v506
        %v509 = vadd.f32 %v501, %v507
        %510 = vset.pattern.permute.xlu0 8
        %511 = vperm.xlu0 %510, %v281
        %v512 = vpop.permute.xlu0 %511
        %v514 = vmul.f32 %v512, %v449
        %v515 = vmul.f32 %v512, %v450
        %v516 = vadd.f32 %v508, %v514
        %v517 = vadd.f32 %v509, %v515
        %518 = vrot.lane.b32.xlu0 %v472, 16
        %v519 = vpop.permute.xlu0 %518
        %520 = vrot.lane.b32.xlu0 %v473, 16
        %v521 = vpop.permute.xlu0 %520
        %vm522 = vcmp.lt.s32.totalorder %v399, 16
        %v523 = vsel %vm522, %v519, %v521
        %v524 = vsel %vm522, %v521, %v519
        %v525 = vlaneseq
        %v526 = vshrl.u32 %v525, 7
        %v527 = vsub.s32 2, %v526
        %v528 = vrot.slane %v282, %v527
        %v529 = vlaneseq
        %v530 = vshrl.u32 %v529, 7
        %v531 = vsub.s32 6, %v530
        %v532 = vrot.slane %v282, %v531
        %v535 = vlaneseq
        %v536 = vshrl.u32 %v535, 7
        %v537 = vsub.s32 2, %v536
        %v538 = vrot.slane %v528, %v537
        %v539 = vlaneseq
        %v540 = vshrl.u32 %v539, 7
        %v541 = vsub.s32 2, %v540
        %v542 = vrot.slane %v532, %v541
        %v543 = vmul.f32 %v524, %v538
        %v544 = vmul.f32 %v523, %v542
        %545 = vrot.lane.b32.xlu0 %v516, 112
        %v546 = vpop.permute.xlu0 %545
        %547 = vrot.lane.b32.xlu0 %v517, 112
        %v548 = vpop.permute.xlu0 %547
        %vm549 = vcmp.lt.s32.totalorder %v399, 112
        %v550 = vsel %vm549, %v546, %v548
        %v551 = vsel %vm549, %v548, %v546
        %v552 = vlaneseq
        %v553 = vshrl.u32 %v552, 7
        %v554 = vsub.s32 3, %v553
        %v555 = vrot.slane %v282, %v554
        %v556 = vlaneseq
        %v557 = vshrl.u32 %v556, 7
        %v558 = vsub.s32 7, %v557
        %v559 = vrot.slane %v282, %v558
        %v562 = vlaneseq
        %v563 = vshrl.u32 %v562, 7
        %v564 = vsub.s32 3, %v563
        %v565 = vrot.slane %v555, %v564
        %v566 = vlaneseq
        %v567 = vshrl.u32 %v566, 7
        %v568 = vsub.s32 3, %v567
        %v569 = vrot.slane %v559, %v568
        %v570 = vmul.f32 %v550, %v565
        %v571 = vmul.f32 %v551, %v569
        %v572 = vadd.f32 %v494, %v543
        %v573 = vadd.f32 %v495, %v544
        %v574 = vadd.f32 %v572, %v570
        %v575 = vadd.f32 %v573, %v571
        %vm576 = vcmp.ge.f32.partialorder %v574, 0.0
        %vm577 = vcmp.ge.f32.partialorder %v575, 0.0
        %v578 = vmul.f32 %v574, 0.1
        %v579 = vmul.f32 %v575, 0.1
        %v580 = vsel %vm576, %v574, %v578
        %v581 = vsel %vm577, %v575, %v579
        %583 = vset.pattern.permute.xlu0 0
        %584 = vperm.xlu0 %583, %v280
        %v585 = vpop.permute.xlu0 %584
        %v587 = vlaneseq
        %v588 = vshrl.u32 %v587, 7
        %v589 = vsub.s32 0, %v588
        %v590 = vrot.slane %v580, %v589
        %v591 = vlaneseq
        %v592 = vshrl.u32 %v591, 7
        %v593 = vsub.s32 0, %v592
        %v594 = vrot.slane %v581, %v593
        %v595 = vmul.f32 %v585, %v590
        %v596 = vmul.f32 %v585, %v594
        %597 = vset.pattern.permute.xlu0 1
        %598 = vperm.xlu0 %597, %v280
        %v599 = vpop.permute.xlu0 %598
        %v601 = vlaneseq
        %v602 = vshrl.u32 %v601, 7
        %v603 = vsub.s32 1, %v602
        %v604 = vrot.slane %v580, %v603
        %v605 = vlaneseq
        %v606 = vshrl.u32 %v605, 7
        %v607 = vsub.s32 1, %v606
        %v608 = vrot.slane %v581, %v607
        %v609 = vmul.f32 %v599, %v604
        %v610 = vmul.f32 %v599, %v608
        %611 = vset.pattern.permute.xlu0 2
        %612 = vperm.xlu0 %611, %v280
        %v613 = vpop.permute.xlu0 %612
        %v615 = vlaneseq
        %v616 = vshrl.u32 %v615, 7
        %v617 = vsub.s32 2, %v616
        %v618 = vrot.slane %v580, %v617
        %v619 = vlaneseq
        %v620 = vshrl.u32 %v619, 7
        %v621 = vsub.s32 2, %v620
        %v622 = vrot.slane %v581, %v621
        %v623 = vmul.f32 %v613, %v618
        %v624 = vmul.f32 %v613, %v622
        %v625 = vadd.f32 %v595, %v623
        %v626 = vadd.f32 %v596, %v624
        %627 = vset.pattern.permute.xlu0 3
        %628 = vperm.xlu0 %627, %v280
        %v629 = vpop.permute.xlu0 %628
        %v631 = vlaneseq
        %v632 = vshrl.u32 %v631, 7
        %v633 = vsub.s32 3, %v632
        %v634 = vrot.slane %v580, %v633
        %v635 = vlaneseq
        %v636 = vshrl.u32 %v635, 7
        %v637 = vsub.s32 3, %v636
        %v638 = vrot.slane %v581, %v637
        %v639 = vmul.f32 %v629, %v634
        %v640 = vmul.f32 %v629, %v638
        %v641 = vadd.f32 %v609, %v639
        %v642 = vadd.f32 %v610, %v640
        %v643 = vadd.f32 %v625, %v641
        %v644 = vadd.f32 %v626, %v642
        %v647 = vcombine.low %v643, %v644
        %649 = vst [vmem:[%s278] sm:$0xff] %v647
        %s650 = sand.u32 %s142, 1
        %s651 = scalar_lea.sflag [#allocation4], %s650
        %s652 = sand.u32 %s142, 1
        %s653 = smul.addr %s652, 8
        %s654 = scalar_lea.vmem [#allocation10], %s653
        // Predicated region
        $region57: #{tpu_custom_call.1} parent=39 // pred_check
          %p655 = pneg %p152
        $region58: #{tpu_custom_call.1} parent=39 // pred_check_branch
          %657 = sbr.rel (%p655) target = $region60
        $region59: #{tpu_custom_call.1} parent=39 // pred_region
          %s659 = ssub.s32 128, 128
          %660 = vsyncadd %s651, %s659
          %s661 = smul.addr %s24, 2
          %s662 = smul.addr %s661, 64
          %s663 = scalar_lea.hbm %s5, %s662
          %s665 = sshll.u32 %s654, 4
          %s666 = int_to_ptr.vmem [resolvable:$true] %s665
          %668 = dma.vmem_to_hbm [thread:$0]  %s666, 128, %s663, %s651
        $region60: #{tpu_custom_call.1} parent=39 // pred_fallthru
          _
      $region40: #{tpu_custom_call.1} parent=5 // pred_fallthru
        _
      %p669 = scmp.le.s32.totalorder 2, %s19
      // Predicated region
      $region61: #{tpu_custom_call.1} parent=5 // pred_check
        %p670 = pneg %p669
      $region62: #{tpu_custom_call.1} parent=5 // pred_check_branch
        %672 = sbr.rel (%p670) target = $region64
      $region63: #{tpu_custom_call.1} parent=5 // pred_region
        %s673 = ssub.s32 %s19, 2
        // Predicated region
        $region65: #{tpu_custom_call.1} parent=63 // pred_check
          %p674 = pneg %p158
        $region66: #{tpu_custom_call.1} parent=63 // pred_check_branch
          %676 = sbr.rel (%p674) target = $region68
        $region67: #{tpu_custom_call.1} parent=63 // pred_region
          %s677 = sand.u32 %s143, 1
          %s678 = scalar_lea.sflag [#allocation4], %s677
          %s679 = sand.u32 %s143, 1
          %s680 = smul.addr %s679, 8
          %s681 = scalar_lea.vmem [#allocation10], %s680
          %682 = dma.done %s678, 128
        $region68: #{tpu_custom_call.1} parent=63 // pred_fallthru
          _
      $region64: #{tpu_custom_call.1} parent=5 // pred_fallthru
        _
    $region6: #{tpu_custom_call.1} parent=1 // loop_footer
      %s23 = sadd.s32 1, %s19
    $region7: #{tpu_custom_call.1} parent=1 // loop_footer_branch
      %18 = sbr.rel target = $region3
    $region8: #{tpu_custom_call.1} parent=1 // loop_exit
      _
    %683 = vsyncpa [#allocation3], 1
    %s684 = scalar_lea.sflag [#allocation3], 1
    %685 = vsyncpa %s684, 1
    %686 = vsyncpa [#allocation6], 1
    %687 = vsyncpa [#allocation9], 1
    %688 = vsyncpa [#allocation4], 1
    %s689 = scalar_lea.sflag [#allocation4], 1
    %690 = vsyncpa %s689, 1

</llo_original>
